<compile_context>
chip_gen: v7x
topology: tpu7x:2x2x1
jax: 0.10.0
libtpu: 0.0.40
codegen_flags: <defaults>
</compile_context>

<pallas_src>
import functools

import jax
import jax.numpy as jnp
from jax.experimental import pallas as pl
from jax.experimental.pallas import tpu as pltpu

_HIGHEST = jax.lax.Precision.HIGHEST


def _round_up(a, m):
    return (a + m - 1) // m * m


def _pointconv_kernel(t_ref, dcv_ref, src_ref, hv_ref, ha_ref, gam_ref, bet_ref,
                      out_ref, acc_ref, cnt_ref, *, c, eps, precision):
    k = pl.program_id(1)

    @pl.when(k == 0)
    def _init():
        acc_ref[...] = jnp.zeros_like(acc_ref)
        cnt_ref[...] = jnp.zeros_like(cnt_ref)

    # (1) d2 - r^2 in one f32 MXU matmul (batch separation + r^2 folded in).
    d = jnp.dot(t_ref[...], src_ref[...],
                preferred_element_type=jnp.float32, precision=precision)
    mask = d <= 0.0                                         # radius-graph mask

    # (2) var_ij + eps in one f32 MXU matmul:
    #     [dc_i, 1, var_d_i+eps, 0..] . [(-2/C) hc_j ; var_h_j ; 1 ; 0..]
    v = jnp.dot(dcv_ref[...], hv_ref[...],
                preferred_element_type=jnp.float32, precision=precision)
    s = jax.lax.rsqrt(jnp.maximum(v, eps))                  # EUP rsqrt

    maskf = jnp.where(mask, 1.0, 0.0)                       # (tm, tn)
    sm = (s * maskf).astype(jnp.bfloat16)                   # masked 1/sigma

    # (3) [agg | rowS] partial sums in one bf16 MXU matmul (ones column in ha
    #     yields rowS for free); single lane reduction for the degree count.
    acc_ref[...] += jnp.dot(sm, ha_ref[...], preferred_element_type=jnp.float32)
    cnt_ref[...] += jnp.sum(maskf, axis=-1, keepdims=True)

    @pl.when(k == pl.num_programs(1) - 1)
    def _finalize():
        acc = acc_ref[...]
        agg, row_s = acc[:, :c], acc[:, c:c + 1]
        dc = dcv_ref[...][:, :c]
        inv = 1.0 / jnp.maximum(cnt_ref[...], 1.0)           # exact mean weight
        out = gam_ref[...] * ((agg - dc * row_s) * inv) + bet_ref[...]
        out_ref[...] = jnp.maximum(out, 0.0).astype(out_ref.dtype)   # ReLU


def pointnet_forward(x, pos, batch, W, b, gamma, beta, r, *, tm=128, tn=512,
                     eps=1e-5):
    """Pallas implementation of PointNet.forward (eval mode)."""
    N, F = x.shape
    C = W.shape[1]
    wx, wp = W[:F], W[F:]

    # ---- grid-invariant precompute, hoisted out of the kernel (runs once) ----
    h = (jnp.dot(x, wx, precision=_HIGHEST)
         + jnp.dot(pos, wp, precision=_HIGHEST) + b[None, :])        # (N, C)
    delta = jnp.dot(pos, wp, precision=_HIGHEST)                     # (N, C)
    hc = h - jnp.mean(h, axis=-1, keepdims=True)
    var_h = jnp.mean(hc * hc, axis=-1)                               # (N,)
    dc = delta - jnp.mean(delta, axis=-1, keepdims=True)
    var_d = jnp.mean(dc * dc, axis=-1)                               # (N,)

    # Batch-as-geometry: 4th coordinate batch_id * 2r puts different clouds out
    # of radius of each other -> no integer batch mask in the hot loop.
    boff = 2.0 * float(r)
    batch_f = batch.astype(jnp.float32)

    # ---- tile sizes ----
    if N > 8:
        tm = min(tm, _round_up(pl.cdiv(N, 2), 8))   # >=2 target tiles (megacore)
    else:
        tm = 8
    tm = max(tm, 8)
    tn = _round_up(max(128, min(tn, _round_up(N, 128))), 128)
    n_t = _round_up(N, tm)
    n_s = _round_up(N, tn)
    pad_t, pad_s = n_t - N, n_s - N
    kvar = _round_up(C + 2, 8)

    # ---- target-side operands (grid axis 0); padded targets get batch -1 ----
    pos_t = jnp.pad(pos, ((0, pad_t), (0, 0)))
    bat_t = jnp.pad(batch_f, (0, pad_t), constant_values=-1.0)
    paug_t = jnp.concatenate([pos_t, (bat_t * boff)[:, None]], axis=1)  # (n_t,4)
    q_t = jnp.sum(paug_t * paug_t, axis=1, keepdims=True)
    t_mat = jnp.concatenate(
        [paug_t, q_t, jnp.ones((n_t, 1), jnp.float32),
         jnp.zeros((n_t, 2), jnp.float32)], axis=1)                    # (n_t, 8)

    dc_t = jnp.pad(dc, ((0, pad_t), (0, 0)))
    vdpe = jnp.pad(var_d + eps, (0, pad_t))[:, None]
    dcv = jnp.concatenate(
        [dc_t, jnp.ones((n_t, 1), jnp.float32), vdpe], axis=1)
    dcv = jnp.pad(dcv, ((0, 0), (0, kvar - (C + 2))))                  # (n_t,kvar)

    # ---- source-side operands (grid axis 1) ----
    paug_s = jnp.concatenate([pos, (batch_f * boff)[:, None]], axis=1)  # (N, 4)
    q_s = jnp.sum(paug_s * paug_s, axis=1)
    neg2p = jnp.pad(-2.0 * paug_s.T, ((0, 0), (0, pad_s)))              # (4, n_s)
    one_s = jnp.pad(jnp.ones((1, N), jnp.float32), ((0, 0), (0, pad_s)))
    # Padded source columns get +1e30 so they fail every radius test.
    qmr2 = jnp.pad(q_s - float(r) ** 2, (0, pad_s),
                   constant_values=1e30)[None, :]
    src = jnp.concatenate(
        [neg2p, one_s, qmr2, jnp.zeros((2, n_s), jnp.float32)], axis=0)  # (8,n_s)

    hv = jnp.concatenate(
        [(-2.0 / C) * hc.T, var_h[None, :], jnp.ones((1, N), jnp.float32)],
        axis=0)
    hv = jnp.pad(hv, ((0, kvar - (C + 2)), (0, pad_s)))                  # (kvar,n_s)

    ha = jnp.concatenate([hc, jnp.ones((N, 1), jnp.float32)], axis=1)
    ha = jnp.pad(ha, ((0, pad_s), (0, 0))).astype(jnp.bfloat16)          # (n_s,C+1)

    gamma2 = gamma[None, :].astype(jnp.float32)
    beta2 = beta[None, :].astype(jnp.float32)

    grid = (n_t // tm, n_s // tn)

    def _call(precision):
        kernel = functools.partial(_pointconv_kernel, c=C, eps=float(eps),
                                   precision=precision)
        return pl.pallas_call(
            kernel,
            out_shape=jax.ShapeDtypeStruct((n_t, C), jnp.float32),
            grid=grid,
            in_specs=[
                pl.BlockSpec((tm, 8), lambda i, k: (i, 0)),       # target geometry
                pl.BlockSpec((tm, kvar), lambda i, k: (i, 0)),    # dc | 1 | var_d+eps
                pl.BlockSpec((8, tn), lambda i, k: (0, k)),       # source geometry
                pl.BlockSpec((kvar, tn), lambda i, k: (0, k)),    # (-2/C)hc^T|var_h|1
                pl.BlockSpec((tn, C + 1), lambda i, k: (k, 0)),   # hc | 1   (bf16)
                pl.BlockSpec((1, C), lambda i, k: (0, 0)),        # LN gamma
                pl.BlockSpec((1, C), lambda i, k: (0, 0)),        # LN beta
            ],
            out_specs=pl.BlockSpec((tm, C), lambda i, k: (i, 0)),
            scratch_shapes=[pltpu.VMEM((tm, C + 1), jnp.float32),  # [agg | rowS]
                            pltpu.VMEM((tm, 1), jnp.float32)],     # degree count
            compiler_params=pltpu.CompilerParams(
                dimension_semantics=("parallel", "arbitrary"),
                vmem_limit_bytes=64 * 1024 * 1024),
        )(t_mat, dcv, src, hv, ha, gamma2, beta2)

    # HIGHEST keeps the radius test and the cancellation-prone variance at f32
    # accuracy on the MXU; fall back to default precision if unsupported.
    try:
        out = jax.block_until_ready(_call(_HIGHEST))
    except Exception:
        out = jax.block_until_ready(_call(None))
    return out[:N]


def pointnet_reference(x, pos, batch, W, b, gamma, beta, r, eps=1e-5):
    """Pure-JAX reference of the same forward pass (eval mode)."""
    N = pos.shape[0]
    d2 = jnp.sum((pos[:, None, :] - pos[None, :, :]) ** 2, axis=-1)
    adj = (d2 <= r * r) & (batch[:, None] == batch[None, :])       # adj[i, j]
    feat = jnp.concatenate(
        [jnp.broadcast_to(x[None, :, :], (N, N, x.shape[1])),
         pos[None, :, :] - pos[:, None, :]], axis=-1)               # (i, j, F+P)
    msg = jnp.dot(feat, W, precision=_HIGHEST) + b
    mu = msg.mean(-1, keepdims=True)
    var = ((msg - mu) ** 2).mean(-1, keepdims=True)
    msg = (msg - mu) / jnp.sqrt(var + eps) * gamma + beta
    cnt = jnp.maximum(adj.sum(-1), 1).astype(jnp.float32)
    out = jnp.where(adj[..., None], msg, 0.0).sum(axis=1) / cnt[:, None]
    return jnp.maximum(out, 0.0)   # ReLU; Dropout(0.1) is identity at eval


if __name__ == "__main__":
    key = jax.random.PRNGKey(0)
    N_PER, B = 16, 2            # 16 points per cloud, 2 clouds
    N = N_PER * B
    F, P, C = 4, 3, 32          # feature dim, position dim, out channels
    R = 0.5                     # radius

    k1, k2, k3, k4 = jax.random.split(key, 4)
    x = jax.random.normal(k1, (N, F), jnp.float32)
    pos = jax.random.uniform(k2, (N, P), jnp.float32)
    batch = jnp.repeat(jnp.arange(B, dtype=jnp.int32), N_PER)

    # local_nn = Linear(F + 3, C) + LayerNorm(C); global_nn = ReLU + Dropout.
    W = jax.random.normal(k3, (F + P, C), jnp.float32) / jnp.sqrt(F + P)
    bL = jax.random.normal(k4, (C,), jnp.float32) * 0.01
    gamma = jnp.ones((C,), jnp.float32)     # LayerNorm default affine init
    beta = jnp.zeros((C,), jnp.float32)

    out = pointnet_forward(x, pos, batch, W, bL, gamma, beta, R)
    out = jax.block_until_ready(out)

    ref = pointnet_reference(x, pos, batch, W, bL, gamma, beta, R)
    assert out.shape == (N, C)
    # Tolerance sized for the bf16-operand aggregation matmul (f32 accumulate).
    assert jnp.allclose(out, ref, atol=3e-2, rtol=3e-2), (
        "max abs err = %f" % float(jnp.max(jnp.abs(out - ref))))

    print("KERNEL_OK")
</pallas_src>

<mosaic_0001>
module attributes {stable_mosaic.version = 11 : i64} {
  func.func @_pointconv_kernel(%arg0: i32, %arg1: i32, %arg2: memref<16x8xf32, #tpu.memory_space<vmem>>, %arg3: memref<16x40xf32, #tpu.memory_space<vmem>>, %arg4: memref<8x128xf32, #tpu.memory_space<vmem>>, %arg5: memref<40x128xf32, #tpu.memory_space<vmem>>, %arg6: memref<128x33xbf16, #tpu.memory_space<vmem>>, %arg7: memref<1x32xf32, #tpu.memory_space<vmem>>, %arg8: memref<1x32xf32, #tpu.memory_space<vmem>>, %arg9: memref<16x32xf32, #tpu.memory_space<vmem>>, %arg10: memref<16x33xf32, #tpu.memory_space<vmem>>, %arg11: memref<16x1xf32, #tpu.memory_space<vmem>>) attributes {dimension_semantics = [#tpu.dimension_semantics<parallel>, #tpu.dimension_semantics<arbitrary>], iteration_bounds = array<i64: 2, 1>, scalar_prefetch = 0 : i64, scratch_operands = 2 : i64, tpu.core_type = #tpu.core_type<tc>, window_params = [{transform_indices = @transform_0, window_bounds = array<i64: 16, 8>}, {transform_indices = @transform_1, window_bounds = array<i64: 16, 40>}, {transform_indices = @transform_2, window_bounds = array<i64: 8, 128>}, {transform_indices = @transform_3, window_bounds = array<i64: 40, 128>}, {transform_indices = @transform_4, window_bounds = array<i64: 128, 33>}, {pipeline_mode = #tpu.pipeline_mode<synchronous>, transform_indices = @transform_5, window_bounds = array<i64: 1, 32>}, {pipeline_mode = #tpu.pipeline_mode<synchronous>, transform_indices = @transform_6, window_bounds = array<i64: 1, 32>}, {transform_indices = @transform_7, window_bounds = array<i64: 16, 32>}]} {
    %c0_i32 = arith.constant 0 : i32
    %0 = arith.cmpi eq, %arg1, %c0_i32 : i32
    %1 = arith.extui %0 : i1 to i32
    %c0_i32_0 = arith.constant 0 : i32
    %2 = arith.cmpi ne, %1, %c0_i32_0 : i32
    scf.if %2 {
      %cst_27 = arith.constant 0.000000e+00 : f32
      %32 = vector.broadcast %cst_27 : f32 to vector<16x33xf32>
      %c0_28 = arith.constant 0 : index
      %c0_29 = arith.constant 0 : index
      %33 = vector.load %arg10[%c0_28, %c0_29] : memref<16x33xf32, #tpu.memory_space<vmem>>, vector<16x33xf32>
      tpu.vector_store %arg10[%c0_28, %c0_29], %32 {strides = array<i32>} : memref<16x33xf32, #tpu.memory_space<vmem>>, vector<16x33xf32>,
      %cst_30 = arith.constant 0.000000e+00 : f32
      %34 = vector.broadcast %cst_30 : f32 to vector<16x1xf32>
      %c0_31 = arith.constant 0 : index
      %c0_32 = arith.constant 0 : index
      %35 = vector.load %arg11[%c0_31, %c0_32] : memref<16x1xf32, #tpu.memory_space<vmem>>, vector<16x1xf32>
      tpu.vector_store %arg11[%c0_31, %c0_32], %34 {strides = array<i32>} : memref<16x1xf32, #tpu.memory_space<vmem>>, vector<16x1xf32>,
    } else {
    }
    %c0 = arith.constant 0 : index
    %c0_1 = arith.constant 0 : index
    %3 = vector.load %arg2[%c0, %c0_1] : memref<16x8xf32, #tpu.memory_space<vmem>>, vector<16x8xf32>
    %c0_2 = arith.constant 0 : index
    %c0_3 = arith.constant 0 : index
    %4 = vector.load %arg4[%c0_2, %c0_3] : memref<8x128xf32, #tpu.memory_space<vmem>>, vector<8x128xf32>
    %cst = arith.constant dense<0.000000e+00> : vector<16x128xf32>
    %5 = tpu.matmul %3, %4, %cst {dimension_numbers = #tpu.dot_dimension_numbers<[1], [0], [0], [1], [0, 0, 1, 1], [], []>, precision = #tpu.contract_precision<fp32>} : vector<16x8xf32>, vector<8x128xf32>, vector<16x128xf32> -> vector<16x128xf32>
    %cst_4 = arith.constant 0.000000e+00 : f32
    %6 = vector.broadcast %cst_4 : f32 to vector<16x128xf32>
    %7 = arith.cmpf ole, %5, %6 : vector<16x128xf32>
    %c0_5 = arith.constant 0 : index
    %c0_6 = arith.constant 0 : index
    %8 = vector.load %arg3[%c0_5, %c0_6] : memref<16x40xf32, #tpu.memory_space<vmem>>, vector<16x40xf32>
    %c0_7 = arith.constant 0 : index
    %c0_8 = arith.constant 0 : index
    %9 = vector.load %arg5[%c0_7, %c0_8] : memref<40x128xf32, #tpu.memory_space<vmem>>, vector<40x128xf32>
    %cst_9 = arith.constant dense<0.000000e+00> : vector<16x128xf32>
    %10 = tpu.matmul %8, %9, %cst_9 {dimension_numbers = #tpu.dot_dimension_numbers<[1], [0], [0], [1], [0, 0, 1, 1], [], []>, precision = #tpu.contract_precision<fp32>} : vector<16x40xf32>, vector<40x128xf32>, vector<16x128xf32> -> vector<16x128xf32>
    %cst_10 = arith.constant 9.99999974E-6 : f32
    %11 = vector.broadcast %cst_10 : f32 to vector<16x128xf32>
    %12 = arith.maximumf %10, %11 : vector<16x128xf32>
    %13 = math.rsqrt %12 : vector<16x128xf32>
    %cst_11 = arith.constant 1.000000e+00 : f32
    %cst_12 = arith.constant 0.000000e+00 : f32
    %14 = vector.broadcast %cst_11 : f32 to vector<16x128xf32>
    %15 = vector.broadcast %cst_12 : f32 to vector<16x128xf32>
    %16 = arith.select %7, %14, %15 : vector<16x128xi1>, vector<16x128xf32>
    %17 = arith.mulf %13, %16 : vector<16x128xf32>
    %18 = arith.truncf %17 : vector<16x128xf32> to vector<16x128xbf16>
    %c0_13 = arith.constant 0 : index
    %c0_14 = arith.constant 0 : index
    %19 = vector.load %arg10[%c0_13, %c0_14] : memref<16x33xf32, #tpu.memory_space<vmem>>, vector<16x33xf32>
    %c0_15 = arith.constant 0 : index
    %c0_16 = arith.constant 0 : index
    %20 = vector.load %arg6[%c0_15, %c0_16] : memref<128x33xbf16, #tpu.memory_space<vmem>>, vector<128x33xbf16>
    %cst_17 = arith.constant dense<0.000000e+00> : vector<16x33xf32>
    %21 = tpu.matmul %18, %20, %cst_17 {dimension_numbers = #tpu.dot_dimension_numbers<[1], [0], [0], [1], [0, 0, 1, 1], [], []>} : vector<16x128xbf16>, vector<128x33xbf16>, vector<16x33xf32> -> vector<16x33xf32>
    %22 = arith.addf %19, %21 : vector<16x33xf32>
    %c0_18 = arith.constant 0 : index
    %c0_19 = arith.constant 0 : index
    %23 = vector.load %arg10[%c0_18, %c0_19] : memref<16x33xf32, #tpu.memory_space<vmem>>, vector<16x33xf32>
    tpu.vector_store %arg10[%c0_18, %c0_19], %22 {strides = array<i32>} : memref<16x33xf32, #tpu.memory_space<vmem>>, vector<16x33xf32>,
    %c0_20 = arith.constant 0 : index
    %c0_21 = arith.constant 0 : index
    %24 = vector.load %arg11[%c0_20, %c0_21] : memref<16x1xf32, #tpu.memory_space<vmem>>, vector<16x1xf32>
    %cst_22 = arith.constant dense<0.000000e+00> : vector<16xf32>
    %25 = vector.multi_reduction <add>, %16, %cst_22 [1] : vector<16x128xf32> to vector<16xf32>
    %26 = vector.shape_cast %25 : vector<16xf32> to vector<16x1xf32>
    %27 = arith.addf %24, %26 : vector<16x1xf32>
    %c0_23 = arith.constant 0 : index
    %c0_24 = arith.constant 0 : index
    %28 = vector.load %arg11[%c0_23, %c0_24] : memref<16x1xf32, #tpu.memory_space<vmem>>, vector<16x1xf32>
    tpu.vector_store %arg11[%c0_23, %c0_24], %27 {strides = array<i32>} : memref<16x1xf32, #tpu.memory_space<vmem>>, vector<16x1xf32>,
    %c0_i32_25 = arith.constant 0 : i32
    %29 = arith.cmpi eq, %arg1, %c0_i32_25 : i32
    %30 = arith.extui %29 : i1 to i32
    %c0_i32_26 = arith.constant 0 : i32
    %31 = arith.cmpi ne, %30, %c0_i32_26 : i32
    scf.if %31 {
      %c0_27 = arith.constant 0 : index
      %c0_28 = arith.constant 0 : index
      %32 = vector.load %arg10[%c0_27, %c0_28] : memref<16x33xf32, #tpu.memory_space<vmem>>, vector<16x33xf32>
      %33 = vector.extract_strided_slice %32 {offsets = [0, 0], sizes = [16, 32], strides = [1, 1]} : vector<16x33xf32> to vector<16x32xf32>
      %34 = vector.extract_strided_slice %32 {offsets = [0, 32], sizes = [16, 1], strides = [1, 1]} : vector<16x33xf32> to vector<16x1xf32>
      %c0_29 = arith.constant 0 : index
      %c0_30 = arith.constant 0 : index
      %35 = vector.load %arg3[%c0_29, %c0_30] : memref<16x40xf32, #tpu.memory_space<vmem>>, vector<16x40xf32>
      %36 = vector.extract_strided_slice %35 {offsets = [0, 0], sizes = [16, 32], strides = [1, 1]} : vector<16x40xf32> to vector<16x32xf32>
      %c0_31 = arith.constant 0 : index
      %c0_32 = arith.constant 0 : index
      %37 = vector.load %arg11[%c0_31, %c0_32] : memref<16x1xf32, #tpu.memory_space<vmem>>, vector<16x1xf32>
      %cst_33 = arith.constant 1.000000e+00 : f32
      %38 = vector.broadcast %cst_33 : f32 to vector<16x1xf32>
      %39 = arith.maximumf %37, %38 : vector<16x1xf32>
      %cst_34 = arith.constant 1.000000e+00 : f32
      %40 = vector.broadcast %cst_34 : f32 to vector<16x1xf32>
      %41 = arith.divf %40, %39 : vector<16x1xf32>
      %c0_35 = arith.constant 0 : index
      %c0_36 = arith.constant 0 : index
      %42 = vector.load %arg7[%c0_35, %c0_36] : memref<1x32xf32, #tpu.memory_space<vmem>>, vector<1x32xf32>
      %43 = vector.broadcast %34 : vector<16x1xf32> to vector<16x32xf32>
      %44 = arith.mulf %36, %43 : vector<16x32xf32>
      %45 = arith.subf %33, %44 : vector<16x32xf32>
      %46 = vector.broadcast %41 : vector<16x1xf32> to vector<16x32xf32>
      %47 = arith.mulf %45, %46 : vector<16x32xf32>
      %48 = vector.broadcast %42 : vector<1x32xf32> to vector<16x32xf32>
      %49 = arith.mulf %48, %47 : vector<16x32xf32>
      %c0_37 = arith.constant 0 : index
      %c0_38 = arith.constant 0 : index
      %50 = vector.load %arg8[%c0_37, %c0_38] : memref<1x32xf32, #tpu.memory_space<vmem>>, vector<1x32xf32>
      %51 = vector.broadcast %50 : vector<1x32xf32> to vector<16x32xf32>
      %52 = arith.addf %49, %51 : vector<16x32xf32>
      %cst_39 = arith.constant 0.000000e+00 : f32
      %53 = vector.broadcast %cst_39 : f32 to vector<16x32xf32>
      %54 = arith.maximumf %52, %53 : vector<16x32xf32>
      %c0_40 = arith.constant 0 : index
      %c0_41 = arith.constant 0 : index
      %55 = vector.load %arg9[%c0_40, %c0_41] : memref<16x32xf32, #tpu.memory_space<vmem>>, vector<16x32xf32>
      tpu.vector_store %arg9[%c0_40, %c0_41], %54 {strides = array<i32>} : memref<16x32xf32, #tpu.memory_space<vmem>>, vector<16x32xf32>,
    } else {
    }
    return
  }
  func.func @transform_0(%arg0: i32, %arg1: i32) -> (i32, i32) {
    %c0_i32 = arith.constant 0 : i32
    %c0_i32_0 = arith.constant 0 : i32
    return %arg0, %c0_i32 : i32, i32
  }
  func.func @transform_1(%arg0: i32, %arg1: i32) -> (i32, i32) {
    %c0_i32 = arith.constant 0 : i32
    %c0_i32_0 = arith.constant 0 : i32
    return %arg0, %c0_i32 : i32, i32
  }
  func.func @transform_2(%arg0: i32, %arg1: i32) -> (i32, i32) {
    %c0_i32 = arith.constant 0 : i32
    %c0_i32_0 = arith.constant 0 : i32
    return %c0_i32, %arg1 : i32, i32
  }
  func.func @transform_3(%arg0: i32, %arg1: i32) -> (i32, i32) {
    %c0_i32 = arith.constant 0 : i32
    %c0_i32_0 = arith.constant 0 : i32
    return %c0_i32, %arg1 : i32, i32
  }
  func.func @transform_4(%arg0: i32, %arg1: i32) -> (i32, i32) {
    %c0_i32 = arith.constant 0 : i32
    %c0_i32_0 = arith.constant 0 : i32
    return %arg1, %c0_i32 : i32, i32
  }
  func.func @transform_5(%arg0: i32, %arg1: i32) -> (i32, i32) {
    %c0_i32 = arith.constant 0 : i32
    %c0_i32_0 = arith.constant 0 : i32
    %c0_i32_1 = arith.constant 0 : i32
    return %c0_i32, %c0_i32_0 : i32, i32
  }
  func.func @transform_6(%arg0: i32, %arg1: i32) -> (i32, i32) {
    %c0_i32 = arith.constant 0 : i32
    %c0_i32_0 = arith.constant 0 : i32
    %c0_i32_1 = arith.constant 0 : i32
    return %c0_i32, %c0_i32_0 : i32, i32
  }
  func.func @transform_7(%arg0: i32, %arg1: i32) -> (i32, i32) {
    %c0_i32 = arith.constant 0 : i32
    %c0_i32_0 = arith.constant 0 : i32
    return %arg0, %c0_i32 : i32, i32
  }
}

module attributes {stable_mosaic.version = 11 : i64} {
  func.func @_pointconv_kernel(%arg0: i32, %arg1: i32, %arg2: memref<16x8xf32, #tpu.memory_space<vmem>>, %arg3: memref<16x40xf32, #tpu.memory_space<vmem>>, %arg4: memref<8x128xf32, #tpu.memory_space<vmem>>, %arg5: memref<40x128xf32, #tpu.memory_space<vmem>>, %arg6: memref<128x33xbf16, #tpu.memory_space<vmem>>, %arg7: memref<1x32xf32, #tpu.memory_space<vmem>>, %arg8: memref<1x32xf32, #tpu.memory_space<vmem>>, %arg9: memref<16x32xf32, #tpu.memory_space<vmem>>, %arg10: memref<16x33xf32, #tpu.memory_space<vmem>>, %arg11: memref<16x1xf32, #tpu.memory_space<vmem>>) attributes {dimension_semantics = [#tpu.dimension_semantics<parallel>, #tpu.dimension_semantics<arbitrary>], iteration_bounds = array<i64: 2, 1>, scalar_prefetch = 0 : i64, scratch_operands = 2 : i64, tpu.core_type = #tpu.core_type<tc>, window_params = [{transform_indices = @transform_0, window_bounds = array<i64: 16, 8>}, {transform_indices = @transform_1, window_bounds = array<i64: 16, 40>}, {transform_indices = @transform_2, window_bounds = array<i64: 8, 128>}, {transform_indices = @transform_3, window_bounds = array<i64: 40, 128>}, {transform_indices = @transform_4, window_bounds = array<i64: 128, 33>}, {pipeline_mode = #tpu.pipeline_mode<synchronous>, transform_indices = @transform_5, window_bounds = array<i64: 1, 32>}, {pipeline_mode = #tpu.pipeline_mode<synchronous>, transform_indices = @transform_6, window_bounds = array<i64: 1, 32>}, {transform_indices = @transform_7, window_bounds = array<i64: 16, 32>}]} {
    %c0_i32 = arith.constant 0 : i32
    %0 = arith.cmpi eq, %arg1, %c0_i32 : i32
    %1 = arith.extui %0 : i1 to i32
    %c0_i32_0 = arith.constant 0 : i32
    %2 = arith.cmpi ne, %1, %c0_i32_0 : i32
    scf.if %2 {
      %cst_27 = arith.constant 0.000000e+00 : f32
      %32 = vector.broadcast %cst_27 : f32 to vector<16x33xf32>
      %c0_28 = arith.constant 0 : index
      %c0_29 = arith.constant 0 : index
      %33 = vector.load %arg10[%c0_28, %c0_29] : memref<16x33xf32, #tpu.memory_space<vmem>>, vector<16x33xf32>
      tpu.vector_store %arg10[%c0_28, %c0_29], %32 {strides = array<i32>} : memref<16x33xf32, #tpu.memory_space<vmem>>, vector<16x33xf32>,
      %cst_30 = arith.constant 0.000000e+00 : f32
      %34 = vector.broadcast %cst_30 : f32 to vector<16x1xf32>
      %c0_31 = arith.constant 0 : index
      %c0_32 = arith.constant 0 : index
      %35 = vector.load %arg11[%c0_31, %c0_32] : memref<16x1xf32, #tpu.memory_space<vmem>>, vector<16x1xf32>
      tpu.vector_store %arg11[%c0_31, %c0_32], %34 {strides = array<i32>} : memref<16x1xf32, #tpu.memory_space<vmem>>, vector<16x1xf32>,
    } else {
    }
    %c0 = arith.constant 0 : index
    %c0_1 = arith.constant 0 : index
    %3 = vector.load %arg2[%c0, %c0_1] : memref<16x8xf32, #tpu.memory_space<vmem>>, vector<16x8xf32>
    %c0_2 = arith.constant 0 : index
    %c0_3 = arith.constant 0 : index
    %4 = vector.load %arg4[%c0_2, %c0_3] : memref<8x128xf32, #tpu.memory_space<vmem>>, vector<8x128xf32>
    %cst = arith.constant dense<0.000000e+00> : vector<16x128xf32>
    %5 = tpu.matmul %3, %4, %cst {dimension_numbers = #tpu.dot_dimension_numbers<[1], [0], [0], [1], [0, 0, 1, 1], [], []>} : vector<16x8xf32>, vector<8x128xf32>, vector<16x128xf32> -> vector<16x128xf32>
    %cst_4 = arith.constant 0.000000e+00 : f32
    %6 = vector.broadcast %cst_4 : f32 to vector<16x128xf32>
    %7 = arith.cmpf ole, %5, %6 : vector<16x128xf32>
    %c0_5 = arith.constant 0 : index
    %c0_6 = arith.constant 0 : index
    %8 = vector.load %arg3[%c0_5, %c0_6] : memref<16x40xf32, #tpu.memory_space<vmem>>, vector<16x40xf32>
    %c0_7 = arith.constant 0 : index
    %c0_8 = arith.constant 0 : index
    %9 = vector.load %arg5[%c0_7, %c0_8] : memref<40x128xf32, #tpu.memory_space<vmem>>, vector<40x128xf32>
    %cst_9 = arith.constant dense<0.000000e+00> : vector<16x128xf32>
    %10 = tpu.matmul %8, %9, %cst_9 {dimension_numbers = #tpu.dot_dimension_numbers<[1], [0], [0], [1], [0, 0, 1, 1], [], []>} : vector<16x40xf32>, vector<40x128xf32>, vector<16x128xf32> -> vector<16x128xf32>
    %cst_10 = arith.constant 9.99999974E-6 : f32
    %11 = vector.broadcast %cst_10 : f32 to vector<16x128xf32>
    %12 = arith.maximumf %10, %11 : vector<16x128xf32>
    %13 = math.rsqrt %12 : vector<16x128xf32>
    %cst_11 = arith.constant 1.000000e+00 : f32
    %cst_12 = arith.constant 0.000000e+00 : f32
    %14 = vector.broadcast %cst_11 : f32 to vector<16x128xf32>
    %15 = vector.broadcast %cst_12 : f32 to vector<16x128xf32>
    %16 = arith.select %7, %14, %15 : vector<16x128xi1>, vector<16x128xf32>
    %17 = arith.mulf %13, %16 : vector<16x128xf32>
    %18 = arith.truncf %17 : vector<16x128xf32> to vector<16x128xbf16>
    %c0_13 = arith.constant 0 : index
    %c0_14 = arith.constant 0 : index
    %19 = vector.load %arg10[%c0_13, %c0_14] : memref<16x33xf32, #tpu.memory_space<vmem>>, vector<16x33xf32>
    %c0_15 = arith.constant 0 : index
    %c0_16 = arith.constant 0 : index
    %20 = vector.load %arg6[%c0_15, %c0_16] : memref<128x33xbf16, #tpu.memory_space<vmem>>, vector<128x33xbf16>
    %cst_17 = arith.constant dense<0.000000e+00> : vector<16x33xf32>
    %21 = tpu.matmul %18, %20, %cst_17 {dimension_numbers = #tpu.dot_dimension_numbers<[1], [0], [0], [1], [0, 0, 1, 1], [], []>} : vector<16x128xbf16>, vector<128x33xbf16>, vector<16x33xf32> -> vector<16x33xf32>
    %22 = arith.addf %19, %21 : vector<16x33xf32>
    %c0_18 = arith.constant 0 : index
    %c0_19 = arith.constant 0 : index
    %23 = vector.load %arg10[%c0_18, %c0_19] : memref<16x33xf32, #tpu.memory_space<vmem>>, vector<16x33xf32>
    tpu.vector_store %arg10[%c0_18, %c0_19], %22 {strides = array<i32>} : memref<16x33xf32, #tpu.memory_space<vmem>>, vector<16x33xf32>,
    %c0_20 = arith.constant 0 : index
    %c0_21 = arith.constant 0 : index
    %24 = vector.load %arg11[%c0_20, %c0_21] : memref<16x1xf32, #tpu.memory_space<vmem>>, vector<16x1xf32>
    %cst_22 = arith.constant dense<0.000000e+00> : vector<16xf32>
    %25 = vector.multi_reduction <add>, %16, %cst_22 [1] : vector<16x128xf32> to vector<16xf32>
    %26 = vector.shape_cast %25 : vector<16xf32> to vector<16x1xf32>
    %27 = arith.addf %24, %26 : vector<16x1xf32>
    %c0_23 = arith.constant 0 : index
    %c0_24 = arith.constant 0 : index
    %28 = vector.load %arg11[%c0_23, %c0_24] : memref<16x1xf32, #tpu.memory_space<vmem>>, vector<16x1xf32>
    tpu.vector_store %arg11[%c0_23, %c0_24], %27 {strides = array<i32>} : memref<16x1xf32, #tpu.memory_space<vmem>>, vector<16x1xf32>,
    %c0_i32_25 = arith.constant 0 : i32
    %29 = arith.cmpi eq, %arg1, %c0_i32_25 : i32
    %30 = arith.extui %29 : i1 to i32
    %c0_i32_26 = arith.constant 0 : i32
    %31 = arith.cmpi ne, %30, %c0_i32_26 : i32
    scf.if %31 {
      %c0_27 = arith.constant 0 : index
      %c0_28 = arith.constant 0 : index
      %32 = vector.load %arg10[%c0_27, %c0_28] : memref<16x33xf32, #tpu.memory_space<vmem>>, vector<16x33xf32>
      %33 = vector.extract_strided_slice %32 {offsets = [0, 0], sizes = [16, 32], strides = [1, 1]} : vector<16x33xf32> to vector<16x32xf32>
      %34 = vector.extract_strided_slice %32 {offsets = [0, 32], sizes = [16, 1], strides = [1, 1]} : vector<16x33xf32> to vector<16x1xf32>
      %c0_29 = arith.constant 0 : index
      %c0_30 = arith.constant 0 : index
      %35 = vector.load %arg3[%c0_29, %c0_30] : memref<16x40xf32, #tpu.memory_space<vmem>>, vector<16x40xf32>
      %36 = vector.extract_strided_slice %35 {offsets = [0, 0], sizes = [16, 32], strides = [1, 1]} : vector<16x40xf32> to vector<16x32xf32>
      %c0_31 = arith.constant 0 : index
      %c0_32 = arith.constant 0 : index
      %37 = vector.load %arg11[%c0_31, %c0_32] : memref<16x1xf32, #tpu.memory_space<vmem>>, vector<16x1xf32>
      %cst_33 = arith.constant 1.000000e+00 : f32
      %38 = vector.broadcast %cst_33 : f32 to vector<16x1xf32>
      %39 = arith.maximumf %37, %38 : vector<16x1xf32>
      %cst_34 = arith.constant 1.000000e+00 : f32
      %40 = vector.broadcast %cst_34 : f32 to vector<16x1xf32>
      %41 = arith.divf %40, %39 : vector<16x1xf32>
      %c0_35 = arith.constant 0 : index
      %c0_36 = arith.constant 0 : index
      %42 = vector.load %arg7[%c0_35, %c0_36] : memref<1x32xf32, #tpu.memory_space<vmem>>, vector<1x32xf32>
      %43 = vector.broadcast %34 : vector<16x1xf32> to vector<16x32xf32>
      %44 = arith.mulf %36, %43 : vector<16x32xf32>
      %45 = arith.subf %33, %44 : vector<16x32xf32>
      %46 = vector.broadcast %41 : vector<16x1xf32> to vector<16x32xf32>
      %47 = arith.mulf %45, %46 : vector<16x32xf32>
      %48 = vector.broadcast %42 : vector<1x32xf32> to vector<16x32xf32>
      %49 = arith.mulf %48, %47 : vector<16x32xf32>
      %c0_37 = arith.constant 0 : index
      %c0_38 = arith.constant 0 : index
      %50 = vector.load %arg8[%c0_37, %c0_38] : memref<1x32xf32, #tpu.memory_space<vmem>>, vector<1x32xf32>
      %51 = vector.broadcast %50 : vector<1x32xf32> to vector<16x32xf32>
      %52 = arith.addf %49, %51 : vector<16x32xf32>
      %cst_39 = arith.constant 0.000000e+00 : f32
      %53 = vector.broadcast %cst_39 : f32 to vector<16x32xf32>
      %54 = arith.maximumf %52, %53 : vector<16x32xf32>
      %c0_40 = arith.constant 0 : index
      %c0_41 = arith.constant 0 : index
      %55 = vector.load %arg9[%c0_40, %c0_41] : memref<16x32xf32, #tpu.memory_space<vmem>>, vector<16x32xf32>
      tpu.vector_store %arg9[%c0_40, %c0_41], %54 {strides = array<i32>} : memref<16x32xf32, #tpu.memory_space<vmem>>, vector<16x32xf32>,
    } else {
    }
    return
  }
  func.func @transform_0(%arg0: i32, %arg1: i32) -> (i32, i32) {
    %c0_i32 = arith.constant 0 : i32
    %c0_i32_0 = arith.constant 0 : i32
    return %arg0, %c0_i32 : i32, i32
  }
  func.func @transform_1(%arg0: i32, %arg1: i32) -> (i32, i32) {
    %c0_i32 = arith.constant 0 : i32
    %c0_i32_0 = arith.constant 0 : i32
    return %arg0, %c0_i32 : i32, i32
  }
  func.func @transform_2(%arg0: i32, %arg1: i32) -> (i32, i32) {
    %c0_i32 = arith.constant 0 : i32
    %c0_i32_0 = arith.constant 0 : i32
    return %c0_i32, %arg1 : i32, i32
  }
  func.func @transform_3(%arg0: i32, %arg1: i32) -> (i32, i32) {
    %c0_i32 = arith.constant 0 : i32
    %c0_i32_0 = arith.constant 0 : i32
    return %c0_i32, %arg1 : i32, i32
  }
  func.func @transform_4(%arg0: i32, %arg1: i32) -> (i32, i32) {
    %c0_i32 = arith.constant 0 : i32
    %c0_i32_0 = arith.constant 0 : i32
    return %arg1, %c0_i32 : i32, i32
  }
  func.func @transform_5(%arg0: i32, %arg1: i32) -> (i32, i32) {
    %c0_i32 = arith.constant 0 : i32
    %c0_i32_0 = arith.constant 0 : i32
    %c0_i32_1 = arith.constant 0 : i32
    return %c0_i32, %c0_i32_0 : i32, i32
  }
  func.func @transform_6(%arg0: i32, %arg1: i32) -> (i32, i32) {
    %c0_i32 = arith.constant 0 : i32
    %c0_i32_0 = arith.constant 0 : i32
    %c0_i32_1 = arith.constant 0 : i32
    return %c0_i32, %c0_i32_0 : i32, i32
  }
  func.func @transform_7(%arg0: i32, %arg1: i32) -> (i32, i32) {
    %c0_i32 = arith.constant 0 : i32
    %c0_i32_0 = arith.constant 0 : i32
    return %arg0, %c0_i32 : i32, i32
  }
}

</mosaic_0001>

<llo_original>
// kernel: tpu_custom_call.1
$region0: #{tpu_custom_call.1}
  #allocation0 [shape = 'u32[]', space=smem, size = 0x4, offset = 0x4, fixed_abs, tag = 'smem constant byte address 0x4 - core index']
  #allocation1 [shape = 'u32[144,128]{1,0:T(1,128)}', space=vmem, size = 0x12000, scoped, tag = 'internal scratch']
  #allocation2 [shape = 'f32[16,33]{1,0:T(8,128)}', space=vmem, size = 0x2000, scoped, tag = 'scratch operand']
  #allocation3 [shape = 'f32[16,1]{1,0:T(8,128)}', space=vmem, size = 0x2000, scoped, tag = 'scratch operand']
  %s0 = inlined_call_operand.hbm [shape: f32[32,8], index: 0, kind: input, shape index: {}]
  %s1 = inlined_call_operand.hbm [shape: f32[32,40], index: 1, kind: input, shape index: {}]
  %s2 = inlined_call_operand.hbm [shape: f32[8,128], index: 2, kind: input, shape index: {}]
  %s3 = inlined_call_operand.hbm [shape: f32[40,128], index: 3, kind: input, shape index: {}]
  %s4 = inlined_call_operand.hbm [shape: bf16[128,33], index: 4, kind: input, shape index: {}]
  %s5 = inlined_call_operand.hbm [shape: f32[1,32], index: 5, kind: input, shape index: {}]
  %s6 = inlined_call_operand.hbm [shape: f32[1,32], index: 6, kind: input, shape index: {}]
  %s7 = inlined_call_operand.hbm [shape: f32[32,32], index: 7, kind: output, shape index: {}]
  %s8 = sld [smem:[#allocation0]]
  $region97: #{tpu_custom_call.1} parent=0
    _
  %s10 = ssub.s32 1, %s8
  %s11 = scalar_select 0, %s10, %s8
  $region1: #{tpu_custom_call.1} parent=0
    #allocation4 [shape = 'u8[16384]{0}', space=vmem, size = 0x4000, scoped, tag = 'input window, operand 0']
    #allocation5 [shape = 's32[2]{0}', space=sflag, size = 0x8, scoped, tag = 'scoped memory for tpu_custom_call.1']
    #allocation6 [shape = 's32[2]{0}', space=sflag, size = 0x8, scoped, tag = 'scoped memory for tpu_custom_call.1']
    #allocation7 [shape = 'u8[16384]{0}', space=vmem, size = 0x4000, scoped, tag = 'input window, operand 1']
    #allocation8 [shape = 's32[2]{0}', space=sflag, size = 0x8, scoped, tag = 'scoped memory for tpu_custom_call.1']
    #allocation9 [shape = 'u8[4096]{0}', space=vmem, size = 0x1000, scoped, tag = 'input window, operand 2, single buffered']
    #allocation10 [shape = 'u8[20480]{0}', space=vmem, size = 0x5000, scoped, tag = 'input window, operand 3, single buffered']
    #allocation11 [shape = 's32[1]{0}', space=sflag, size = 0x4, scoped, tag = 'scoped memory for tpu_custom_call.1']
    #allocation12 [shape = 'u8[32768]{0}', space=vmem, size = 0x8000, scoped, tag = 'input window, operand 4, single buffered']
    #allocation13 [shape = 'u8[512]{0}', space=vmem, size = 0x400, scoped, tag = 'input window, operand 5, single buffered']
    #allocation14 [shape = 's32[1]{0}', space=sflag, size = 0x4, scoped, tag = 'scoped memory for tpu_custom_call.1']
    #allocation15 [shape = 'u8[512]{0}', space=vmem, size = 0x400, scoped, tag = 'input window, operand 6, single buffered']
    #allocation16 [shape = 'u8[16384]{0}', space=vmem, size = 0x4000, scoped, tag = 'output window, operand 0']
    %12 = vsyncpa [#allocation5], 0
    %s13 = scalar_lea.sflag [#allocation5], 1
    %14 = vsyncpa %s13, 0
    %15 = vsyncpa [#allocation8], 0
    %s16 = scalar_lea.sflag [#allocation8], 1
    %17 = vsyncpa %s16, 0
    %18 = vsyncpa [#allocation11], 0
    %19 = vsyncpa [#allocation14], 0
    %20 = vsyncpa [#allocation6], 0
    %s21 = scalar_lea.sflag [#allocation6], 1
    %22 = vsyncpa %s21, 0
    loop: start=0, step=1, limit=4
    $region2: #{tpu_custom_call.1} parent=1 // loop_pre_header
      _
    $region3: #{tpu_custom_call.1} parent=1 // loop_header
      %s24 = sphi 0, %s28
      %p25 = scmp.ge.s32.totalorder %s24, 4
      %s31 = sphi 0, %s43
      %s32 = sphi 0, %s39
      %s33 = sphi 0, %s31
      %s34 = sphi 0, %s32
      %s35 = sphi 0, %s33
      %s36 = sphi 0, %s34
      %s46 = sphi 0, %s48
      %s49 = sphi 0, %s46
      %s50 = sphi 0, %s49
      %s66 = sphi 0, %s50
      %s72 = sphi 0, %s74
      %s75 = sphi 0, %s72
      %s76 = sphi 0, %s75
      %s92 = sphi 0, %s76
      %s98 = sphi 0, %s100
      %s101 = sphi 0, %s98
      %s102 = sphi 0, %s101
      %s118 = sphi 0, %s102
      %s124 = sphi 0, %s126
      %s127 = sphi 0, %s124
      %s128 = sphi 0, %s127
      %s144 = sphi 0, %s128
      %s150 = sphi 0, %s152
      %s153 = sphi 0, %s150
      %s154 = sphi 0, %s153
      %s170 = sphi 0, %s154
      %s174 = sphi 0, %s174
      %s176 = sphi 0, %s174
      %s177 = sphi 0, %s176
      %s191 = sphi 0, %s177
      %s195 = sphi 0, %s195
      %s197 = sphi 0, %s195
      %s198 = sphi 0, %s197
      %s212 = sphi 0, %s198
      %s218 = sphi 0, %s220
      %s221 = sphi 0, %s218
      %s222 = sphi 0, %s221
      %s238 = sphi 0, %s222
    $region4: #{tpu_custom_call.1} parent=1 // loop_header_branch
      %27 = sbr.rel (%p25) target = $region8
    $region5: #{tpu_custom_call.1} parent=1 // loop_body
      %s29 = ssub.s32 %s24, 1
      %s30 = ssub.s32 %s24, 2
      %s37 = sadd.s32 1, %s32
      %p38 = scmp.ge.s32.totalorder %s37, 1
      %s39 = scalar_select %p38, 0, %s37
      %s40 = sadd.s32 1, %s31
      %s41 = scalar_select %p38, %s40, %s31
      %p42 = scmp.ge.s32.totalorder %s41, 2
      %s43 = scalar_select %p42, 0, %s41
      %s44 = ssub.s32 %s31, %s43
      %p45 = scmp.eq.s32.totalorder %s44, 0
      %s47 = sadd.s32 %s46, 1
      %s48 = scalar_select %p45, %s46, %s47
      %p51 = pneg %p45
      %p52 = scmp.eq.s32.totalorder %s24, 1
      %p53 = por %p51, %p52
      %p54 = scmp.ne.s32.totalorder %s46, %s49
      %p55 = scmp.eq.s32.totalorder %s24, 0
      %p56 = por %p54, %p55
      %p57 = scmp.ne.s32.totalorder %s46, %s49
      %p58 = scmp.eq.s32.totalorder %s29, 1
      %p59 = por %p57, %p58
      %p60 = scmp.ne.s32.totalorder %s49, %s50
      %p61 = scmp.eq.s32.totalorder %s29, 0
      %p62 = por %p60, %p61
      %p63 = scmp.ne.s32.totalorder %s49, %s50
      %p64 = scmp.eq.s32.totalorder %s30, 1
      %p65 = por %p63, %p64
      %p67 = scmp.ne.s32.totalorder %s50, %s66
      %p68 = scmp.eq.s32.totalorder %s30, 0
      %p69 = por %p67, %p68
      %s70 = ssub.s32 %s31, %s43
      %p71 = scmp.eq.s32.totalorder %s70, 0
      %s73 = sadd.s32 %s72, 1
      %s74 = scalar_select %p71, %s72, %s73
      %p77 = pneg %p71
      %p78 = scmp.eq.s32.totalorder %s24, 1
      %p79 = por %p77, %p78
      %p80 = scmp.ne.s32.totalorder %s72, %s75
      %p81 = scmp.eq.s32.totalorder %s24, 0
      %p82 = por %p80, %p81
      %p83 = scmp.ne.s32.totalorder %s72, %s75
      %p84 = scmp.eq.s32.totalorder %s29, 1
      %p85 = por %p83, %p84
      %p86 = scmp.ne.s32.totalorder %s75, %s76
      %p87 = scmp.eq.s32.totalorder %s29, 0
      %p88 = por %p86, %p87
      %p89 = scmp.ne.s32.totalorder %s75, %s76
      %p90 = scmp.eq.s32.totalorder %s30, 1
      %p91 = por %p89, %p90
      %p93 = scmp.ne.s32.totalorder %s76, %s92
      %p94 = scmp.eq.s32.totalorder %s30, 0
      %p95 = por %p93, %p94
      %s96 = ssub.s32 %s32, %s39
      %p97 = scmp.eq.s32.totalorder %s96, 0
      %s99 = sadd.s32 %s98, 1
      %s100 = scalar_select %p97, %s98, %s99
      %p103 = pneg %p97
      %p104 = scmp.eq.s32.totalorder %s24, 1
      %p105 = por %p103, %p104
      %p106 = scmp.ne.s32.totalorder %s98, %s101
      %p107 = scmp.eq.s32.totalorder %s24, 0
      %p108 = por %p106, %p107
      %p109 = scmp.ne.s32.totalorder %s98, %s101
      %p110 = scmp.eq.s32.totalorder %s29, 1
      %p111 = por %p109, %p110
      %p112 = scmp.ne.s32.totalorder %s101, %s102
      %p113 = scmp.eq.s32.totalorder %s29, 0
      %p114 = por %p112, %p113
      %p115 = scmp.ne.s32.totalorder %s101, %s102
      %p116 = scmp.eq.s32.totalorder %s30, 1
      %p117 = por %p115, %p116
      %p119 = scmp.ne.s32.totalorder %s102, %s118
      %p120 = scmp.eq.s32.totalorder %s30, 0
      %p121 = por %p119, %p120
      %s122 = ssub.s32 %s32, %s39
      %p123 = scmp.eq.s32.totalorder %s122, 0
      %s125 = sadd.s32 %s124, 1
      %s126 = scalar_select %p123, %s124, %s125
      %p129 = pneg %p123
      %p130 = scmp.eq.s32.totalorder %s24, 1
      %p131 = por %p129, %p130
      %p132 = scmp.ne.s32.totalorder %s124, %s127
      %p133 = scmp.eq.s32.totalorder %s24, 0
      %p134 = por %p132, %p133
      %p135 = scmp.ne.s32.totalorder %s124, %s127
      %p136 = scmp.eq.s32.totalorder %s29, 1
      %p137 = por %p135, %p136
      %p138 = scmp.ne.s32.totalorder %s127, %s128
      %p139 = scmp.eq.s32.totalorder %s29, 0
      %p140 = por %p138, %p139
      %p141 = scmp.ne.s32.totalorder %s127, %s128
      %p142 = scmp.eq.s32.totalorder %s30, 1
      %p143 = por %p141, %p142
      %p145 = scmp.ne.s32.totalorder %s128, %s144
      %p146 = scmp.eq.s32.totalorder %s30, 0
      %p147 = por %p145, %p146
      %s148 = ssub.s32 %s32, %s39
      %p149 = scmp.eq.s32.totalorder %s148, 0
      %s151 = sadd.s32 %s150, 1
      %s152 = scalar_select %p149, %s150, %s151
      %p155 = pneg %p149
      %p156 = scmp.eq.s32.totalorder %s24, 1
      %p157 = por %p155, %p156
      %p158 = scmp.ne.s32.totalorder %s150, %s153
      %p159 = scmp.eq.s32.totalorder %s24, 0
      %p160 = por %p158, %p159
      %p161 = scmp.ne.s32.totalorder %s150, %s153
      %p162 = scmp.eq.s32.totalorder %s29, 1
      %p163 = por %p161, %p162
      %p164 = scmp.ne.s32.totalorder %s153, %s154
      %p165 = scmp.eq.s32.totalorder %s29, 0
      %p166 = por %p164, %p165
      %p167 = scmp.ne.s32.totalorder %s153, %s154
      %p168 = scmp.eq.s32.totalorder %s30, 1
      %p169 = por %p167, %p168
      %p171 = scmp.ne.s32.totalorder %s154, %s170
      %p172 = scmp.eq.s32.totalorder %s30, 0
      %p173 = por %p171, %p172
      %s175 = sadd.s32 %s174, 1
      %p178 = scmp.eq.s32.totalorder %s24, 1
      %p179 = scmp.ne.s32.totalorder %s174, %s176
      %p180 = scmp.eq.s32.totalorder %s24, 0
      %p181 = por %p179, %p180
      %p182 = scmp.ne.s32.totalorder %s174, %s176
      %p183 = scmp.eq.s32.totalorder %s29, 1
      %p184 = por %p182, %p183
      %p185 = scmp.ne.s32.totalorder %s176, %s177
      %p186 = scmp.eq.s32.totalorder %s29, 0
      %p187 = por %p185, %p186
      %p188 = scmp.ne.s32.totalorder %s176, %s177
      %p189 = scmp.eq.s32.totalorder %s30, 1
      %p190 = por %p188, %p189
      %p192 = scmp.ne.s32.totalorder %s177, %s191
      %p193 = scmp.eq.s32.totalorder %s30, 0
      %p194 = por %p192, %p193
      %s196 = sadd.s32 %s195, 1
      %p199 = scmp.eq.s32.totalorder %s24, 1
      %p200 = scmp.ne.s32.totalorder %s195, %s197
      %p201 = scmp.eq.s32.totalorder %s24, 0
      %p202 = por %p200, %p201
      %p203 = scmp.ne.s32.totalorder %s195, %s197
      %p204 = scmp.eq.s32.totalorder %s29, 1
      %p205 = por %p203, %p204
      %p206 = scmp.ne.s32.totalorder %s197, %s198
      %p207 = scmp.eq.s32.totalorder %s29, 0
      %p208 = por %p206, %p207
      %p209 = scmp.ne.s32.totalorder %s197, %s198
      %p210 = scmp.eq.s32.totalorder %s30, 1
      %p211 = por %p209, %p210
      %p213 = scmp.ne.s32.totalorder %s198, %s212
      %p214 = scmp.eq.s32.totalorder %s30, 0
      %p215 = por %p213, %p214
      %s216 = ssub.s32 %s31, %s43
      %p217 = scmp.eq.s32.totalorder %s216, 0
      %s219 = sadd.s32 %s218, 1
      %s220 = scalar_select %p217, %s218, %s219
      %p223 = pneg %p217
      %p224 = scmp.eq.s32.totalorder %s24, 1
      %p225 = por %p223, %p224
      %p226 = scmp.ne.s32.totalorder %s218, %s221
      %p227 = scmp.eq.s32.totalorder %s24, 0
      %p228 = por %p226, %p227
      %p229 = scmp.ne.s32.totalorder %s218, %s221
      %p230 = scmp.eq.s32.totalorder %s29, 1
      %p231 = por %p229, %p230
      %p232 = scmp.ne.s32.totalorder %s221, %s222
      %p233 = scmp.eq.s32.totalorder %s29, 0
      %p234 = por %p232, %p233
      %p235 = scmp.ne.s32.totalorder %s221, %s222
      %p236 = scmp.eq.s32.totalorder %s30, 1
      %p237 = por %p235, %p236
      %p239 = scmp.ne.s32.totalorder %s222, %s238
      %p240 = scmp.eq.s32.totalorder %s30, 0
      %p241 = por %p239, %p240
      %p242 = scmp.le.s32.totalorder 1, %s24
      %p243 = scmp.lt.s32.totalorder %s24, 3
      %p244 = pnand %p242, %p243
      %p245 = pneg %p244
      // Predicated region
      $region9: #{tpu_custom_call.1} parent=5 // pred_check
        _
      $region10: #{tpu_custom_call.1} parent=5 // pred_check_branch
        %247 = sbr.rel (%p244) target = $region12
      $region11: #{tpu_custom_call.1} parent=5 // pred_region
        %s248 = ssub.s32 %s24, 1
        // Predicated region
        $region13: #{tpu_custom_call.1} parent=11 // pred_check
          %p249 = pneg %p114
        $region14: #{tpu_custom_call.1} parent=11 // pred_check_branch
          %251 = sbr.rel (%p249) target = $region16
        $region15: #{tpu_custom_call.1} parent=11 // pred_region
          %s253 = ssub.s32 128, 128
          %254 = vsyncadd [#allocation8], %s253
          %s255 = smul.addr %s34, 128
          %s256 = scalar_lea.hbm %s2, %s255
          %s258 = sshll.u32 [#allocation9], 4
          %s259 = int_to_ptr.vmem [resolvable:$true] %s258
          %261 = dma.hbm_to_vmem [thread:$0]  %s256, 128, %s259, [#allocation8]
        $region16: #{tpu_custom_call.1} parent=11 // pred_fallthru
          _
        // Predicated region
        $region17: #{tpu_custom_call.1} parent=11 // pred_check
          %p262 = pneg %p140
        $region18: #{tpu_custom_call.1} parent=11 // pred_check_branch
          %264 = sbr.rel (%p262) target = $region20
        $region19: #{tpu_custom_call.1} parent=11 // pred_region
          %s266 = ssub.s32 640, 640
          %267 = vsyncadd [#allocation11], %s266
          %s268 = smul.addr %s34, 128
          %s269 = scalar_lea.hbm %s3, %s268
          %s270 = sshll.u32 [#allocation10], 4
          %s271 = int_to_ptr.vmem [resolvable:$true] %s270
          %276 = dma.hbm_to_vmem [thread:$0]  %s269, 640, %s271, [#allocation11], 128, 128, 8
        $region20: #{tpu_custom_call.1} parent=11 // pred_fallthru
          _
        // Predicated region
        $region21: #{tpu_custom_call.1} parent=11 // pred_check
          %p277 = pneg %p166
        $region22: #{tpu_custom_call.1} parent=11 // pred_check_branch
          %279 = sbr.rel (%p277) target = $region24
        $region23: #{tpu_custom_call.1} parent=11 // pred_region
          %s280 = smul.u32 16, %s34
          %s282 = ssub.s32 1024, 1024
          %283 = vsyncadd [#allocation11], %s282
          %s284 = smul.addr %s280, 64
          %s285 = scalar_lea.hbm %s4, %s284
          %s286 = sshll.u32 [#allocation12], 4
          %s287 = int_to_ptr.vmem [resolvable:$true] %s286
          %292 = dma.hbm_to_vmem [thread:$0]  %s285, 1024, %s287, [#allocation11], 64, 64, 4
        $region24: #{tpu_custom_call.1} parent=11 // pred_fallthru
          _
        // Predicated region
        $region25: #{tpu_custom_call.1} parent=11 // pred_check
          %p293 = pneg %p187
        $region26: #{tpu_custom_call.1} parent=11 // pred_check_branch
          %295 = sbr.rel (%p293) target = $region28
        $region27: #{tpu_custom_call.1} parent=11 // pred_region
          %s297 = ssub.s32 16, 16
          %298 = vsyncadd [#allocation14], %s297
          %s300 = sshll.u32 [#allocation13], 4
          %s301 = int_to_ptr.vmem [resolvable:$true] %s300
          %303 = dma.hbm_to_vmem [thread:$0]  %s5, 16, %s301, [#allocation14]
        $region28: #{tpu_custom_call.1} parent=11 // pred_fallthru
          _
        // Predicated region
        $region29: #{tpu_custom_call.1} parent=11 // pred_check
          %p304 = pneg %p208
        $region30: #{tpu_custom_call.1} parent=11 // pred_check_branch
          %306 = sbr.rel (%p304) target = $region32
        $region31: #{tpu_custom_call.1} parent=11 // pred_region
          %s308 = ssub.s32 16, 16
          %309 = vsyncadd [#allocation14], %s308
          %s311 = sshll.u32 [#allocation15], 4
          %s312 = int_to_ptr.vmem [resolvable:$true] %s311
          %314 = dma.hbm_to_vmem [thread:$0]  %s6, 16, %s312, [#allocation14]
        $region32: #{tpu_custom_call.1} parent=11 // pred_fallthru
          _
      $region12: #{tpu_custom_call.1} parent=5 // pred_fallthru
        _
      %p315 = scmp.lt.s32.totalorder %s24, 2
      // Predicated region
      $region33: #{tpu_custom_call.1} parent=5 // pred_check
        %p316 = pneg %p315
      $region34: #{tpu_custom_call.1} parent=5 // pred_check_branch
        %318 = sbr.rel (%p316) target = $region36
      $region35: #{tpu_custom_call.1} parent=5 // pred_region
        // Predicated region
        $region37: #{tpu_custom_call.1} parent=35 // pred_check
          %p319 = pneg %p56
        $region38: #{tpu_custom_call.1} parent=35 // pred_check_branch
          %321 = sbr.rel (%p319) target = $region40
        $region39: #{tpu_custom_call.1} parent=35 // pred_region
          %s322 = sand.u32 %s46, 1
          %s323 = scalar_lea.sflag [#allocation5], %s322
          %s324 = sand.u32 %s46, 1
          %s325 = smul.addr %s324, 16
          %s326 = scalar_lea.vmem [#allocation4], %s325
          %s327 = smul.u32 2, %s31
          %s329 = ssub.s32 256, 256
          %330 = vsyncadd %s323, %s329
          %s331 = smul.addr %s327, 128
          %s332 = scalar_lea.hbm %s0, %s331
          %s333 = sshll.u32 %s326, 4
          %s334 = int_to_ptr.vmem [resolvable:$true] %s333
          %339 = dma.hbm_to_vmem [thread:$0]  %s332, 256, %s334, %s323, 128, 128, 8
        $region40: #{tpu_custom_call.1} parent=35 // pred_fallthru
          _
        // Predicated region
        $region41: #{tpu_custom_call.1} parent=35 // pred_check
          %p340 = pneg %p82
        $region42: #{tpu_custom_call.1} parent=35 // pred_check_branch
          %342 = sbr.rel (%p340) target = $region44
        $region43: #{tpu_custom_call.1} parent=35 // pred_region
          %s343 = sand.u32 %s24, 1
          %s344 = scalar_lea.sflag [#allocation8], %s343
          %s345 = sand.u32 %s72, 1
          %s346 = smul.addr %s345, 16
          %s347 = scalar_lea.vmem [#allocation7], %s346
          %s348 = smul.u32 2, %s31
          %s350 = ssub.s32 256, 256
          %351 = vsyncadd %s344, %s350
          %s352 = smul.addr %s348, 128
          %s353 = scalar_lea.hbm %s1, %s352
          %s354 = sshll.u32 %s347, 4
          %s355 = int_to_ptr.vmem [resolvable:$true] %s354
          %360 = dma.hbm_to_vmem [thread:$0]  %s353, 256, %s355, %s344, 128, 128, 8
        $region44: #{tpu_custom_call.1} parent=35 // pred_fallthru
          _
      $region36: #{tpu_custom_call.1} parent=5 // pred_fallthru
        _
      %p361 = scmp.le.s32.totalorder 1, %s24
      %p362 = scmp.lt.s32.totalorder %s24, 3
      %p363 = pnand %p361, %p362
      %p364 = pneg %p363
      // Predicated region
      $region45: #{tpu_custom_call.1} parent=5 // pred_check
        _
      $region46: #{tpu_custom_call.1} parent=5 // pred_check_branch
        %366 = sbr.rel (%p363) target = $region48
      $region47: #{tpu_custom_call.1} parent=5 // pred_region
        %s367 = ssub.s32 %s24, 1
        %s368 = sand.u32 %s49, 1
        %s369 = scalar_lea.sflag [#allocation5], %s368
        %s370 = sand.u32 %s49, 1
        %s371 = smul.addr %s370, 16
        %s372 = scalar_lea.vmem [#allocation4], %s371
        // Predicated region
        $region49: #{tpu_custom_call.1} parent=47 // pred_check
          %p373 = pneg %p62
        $region50: #{tpu_custom_call.1} parent=47 // pred_check_branch
          %375 = sbr.rel (%p373) target = $region52
        $region51: #{tpu_custom_call.1} parent=47 // pred_region
          %376 = dma.done %s369, 256
        $region52: #{tpu_custom_call.1} parent=47 // pred_fallthru
          _
        %s377 = sand.u32 %s29, 1
        %s378 = scalar_lea.sflag [#allocation8], %s377
        %s379 = sand.u32 %s75, 1
        %s380 = smul.addr %s379, 16
        %s381 = scalar_lea.vmem [#allocation7], %s380
        // Predicated region
        $region53: #{tpu_custom_call.1} parent=47 // pred_check
          %p382 = pneg %p88
        $region54: #{tpu_custom_call.1} parent=47 // pred_check_branch
          %384 = sbr.rel (%p382) target = $region56
        $region55: #{tpu_custom_call.1} parent=47 // pred_region
          %385 = dma.done %s378, 256
        $region56: #{tpu_custom_call.1} parent=47 // pred_fallthru
          _
        // Predicated region
        $region57: #{tpu_custom_call.1} parent=47 // pred_check
          %p386 = pneg %p114
        $region58: #{tpu_custom_call.1} parent=47 // pred_check_branch
          %388 = sbr.rel (%p386) target = $region60
        $region59: #{tpu_custom_call.1} parent=47 // pred_region
          %389 = dma.done [#allocation8], 128
        $region60: #{tpu_custom_call.1} parent=47 // pred_fallthru
          _
        // Predicated region
        $region61: #{tpu_custom_call.1} parent=47 // pred_check
          %p390 = pneg %p140
        $region62: #{tpu_custom_call.1} parent=47 // pred_check_branch
          %392 = sbr.rel (%p390) target = $region64
        $region63: #{tpu_custom_call.1} parent=47 // pred_region
          %393 = dma.done [#allocation11], 640
        $region64: #{tpu_custom_call.1} parent=47 // pred_fallthru
          _
        // Predicated region
        $region65: #{tpu_custom_call.1} parent=47 // pred_check
          %p394 = pneg %p166
        $region66: #{tpu_custom_call.1} parent=47 // pred_check_branch
          %396 = sbr.rel (%p394) target = $region68
        $region67: #{tpu_custom_call.1} parent=47 // pred_region
          %397 = dma.done [#allocation11], 1024
        $region68: #{tpu_custom_call.1} parent=47 // pred_fallthru
          _
        // Predicated region
        $region69: #{tpu_custom_call.1} parent=47 // pred_check
          %p398 = pneg %p187
        $region70: #{tpu_custom_call.1} parent=47 // pred_check_branch
          %400 = sbr.rel (%p398) target = $region72
        $region71: #{tpu_custom_call.1} parent=47 // pred_region
          %401 = dma.done [#allocation14], 16
        $region72: #{tpu_custom_call.1} parent=47 // pred_fallthru
          _
        // Predicated region
        $region73: #{tpu_custom_call.1} parent=47 // pred_check
          %p402 = pneg %p208
        $region74: #{tpu_custom_call.1} parent=47 // pred_check_branch
          %404 = sbr.rel (%p402) target = $region76
        $region75: #{tpu_custom_call.1} parent=47 // pred_region
          %405 = dma.done [#allocation14], 16
        $region76: #{tpu_custom_call.1} parent=47 // pred_fallthru
          _
        %s406 = sand.u32 %s49, 1
        %s407 = scalar_lea.sflag [#allocation5], %s406
        %s408 = sand.u32 %s49, 1
        %s409 = smul.addr %s408, 16
        %s410 = scalar_lea.vmem [#allocation4], %s409
        %p411 = pneg %p62
        %p412 = pneg %p59
        %s413 = sand.u32 %s29, 1
        %s414 = scalar_lea.sflag [#allocation8], %s413
        %s415 = sand.u32 %s75, 1
        %s416 = smul.addr %s415, 16
        %s417 = scalar_lea.vmem [#allocation7], %s416
        %p418 = pneg %p88
        %p419 = pneg %p85
        %p420 = pneg %p114
        %p421 = pneg %p111
        %p422 = pneg %p140
        %p423 = pneg %p137
        %p424 = pneg %p166
        %p425 = pneg %p163
        %p426 = pneg %p187
        %p427 = pneg %p184
        %p428 = pneg %p208
        %p429 = pneg %p205
        %p430 = pneg %p234
        %p431 = pneg %p231
        %s432 = sand.u32 %s221, 1
        %s433 = scalar_lea.sflag [#allocation6], %s432
        %s434 = sand.u32 %s221, 1
        %s435 = smul.addr %s434, 16
        %s436 = scalar_lea.vmem [#allocation16], %s435
        %s437 = smul.u32 2, %s33
        %s438 = smul.u32 2, %s33
        %s439 = smul.u32 16, %s34
        %s440 = smul.u32 2, %s33
        %p442 = scmp.eq.s32.totalorder %s34, 0
        // Predicated region
        $region77: #{tpu_custom_call.1} parent=47 // pred_check
          %p443 = pneg %p442
        $region78: #{tpu_custom_call.1} parent=47 // pred_check_branch
          %445 = sbr.rel (%p443) target = $region80
        $region79: #{tpu_custom_call.1} parent=47 // pred_region
          %vm446 = vcmask 269312
          %447 = vst.msk [vmem:[#allocation2] sm:$0xff] %vm446, 0.0
          %448 = vst.msk [vmem:[#allocation2 + $0x8] sm:$0xff] %vm446, 0.0
          %vm449 = vcmask 7168
          %450 = vst.msk [vmem:[#allocation3] sm:$0xff] %vm449, 0.0
          %451 = vst.msk [vmem:[#allocation3 + $0x8] sm:$0xff] %vm449, 0.0
        $region80: #{tpu_custom_call.1} parent=47 // pred_fallthru
          _
        %v452 = vld [vmem:[%s372] sm:$0xff]
        %v453 = vld [vmem:[%s372 + $0x8] sm:$0xff]
        %v454 = vld [vmem:[#allocation9] sm:$0xff]
        %vm455 = vcmask 64512
        %v457 = vsel %vm455, %v452, 0
        %v460 = vsel %vm455, %v453, 0
        %462 = vmatprep.subr.mxu0 0.0
        %v463 = vand.u32 %v454, 4294901760
        %464 = vmatpush1.msra.mxu0 %v463
        %465 = vmatprep.subr.mxu0 0.0
        %466 = vmatpush1.msra.mxu0 0.0
        %467 = vmatprep.subr.mxu0 0.0
        %468 = vmatpush1.msra.mxu0 0.0
        %469 = vmatprep.subr.mxu0 0.0
        %470 = vmatpush1.msra.mxu0 0.0
        %471 = vmatprep.subr.mxu0 0.0
        %472 = vmatpush1.msra.mxu0 0.0
        %473 = vmatprep.subr.mxu0 0.0
        %474 = vmatpush1.msra.mxu0 0.0
        %475 = vmatprep.subr.mxu0 0.0
        %476 = vmatpush1.msra.mxu0 0.0
        %477 = vmatprep.subr.mxu0 0.0
        %478 = vmatpush1.msra.mxu0 0.0
        %479 = vmatprep.subr.mxu0 0.0
        %480 = vmatpush1.msra.mxu0 0.0
        %481 = vmatprep.subr.mxu0 0.0
        %482 = vmatpush1.msra.mxu0 0.0
        %483 = vmatprep.subr.mxu0 0.0
        %484 = vmatpush1.msra.mxu0 0.0
        %485 = vmatprep.subr.mxu0 0.0
        %486 = vmatpush1.msra.mxu0 0.0
        %487 = vmatprep.subr.mxu0 0.0
        %488 = vmatpush1.msra.mxu0 0.0
        %489 = vmatprep.subr.mxu0 0.0
        %490 = vmatpush1.msra.mxu0 0.0
        %491 = vmatprep.subr.mxu0 0.0
        %492 = vmatpush1.msra.mxu0 0.0
        %493 = vmatprep.subr.mxu0 0.0
        %494 = vmatpush1.msra.mxu0 0.0
        %495 = vmatprep.subr.mxu0 0.0
        %496 = vmatpush1.msra.mxu0 0.0
        %497 = vmatprep.subr.mxu0 0.0
        %498 = vmatpush1.msra.mxu0 0.0
        %499 = vmatprep.subr.mxu0 0.0
        %500 = vmatpush1.msra.mxu0 0.0
        %501 = vmatprep.subr.mxu0 0.0
        %502 = vmatpush1.msra.mxu0 0.0
        %503 = vmatprep.subr.mxu0 0.0
        %504 = vmatpush1.msra.mxu0 0.0
        %505 = vmatprep.subr.mxu0 0.0
        %506 = vmatpush1.msra.mxu0 0.0
        %507 = vmatprep.subr.mxu0 0.0
        %508 = vmatpush1.msra.mxu0 0.0
        %509 = vmatprep.subr.mxu0 0.0
        %510 = vmatpush1.msra.mxu0 0.0
        %511 = vmatprep.subr.mxu0 0.0
        %512 = vmatpush1.msra.mxu0 0.0
        %513 = vmatprep.subr.mxu0 0.0
        %514 = vmatpush1.msra.mxu0 0.0
        %515 = vmatprep.subr.mxu0 0.0
        %516 = vmatpush1.msra.mxu0 0.0
        %517 = vmatprep.subr.mxu0 0.0
        %518 = vmatpush1.msra.mxu0 0.0
        %519 = vmatprep.subr.mxu0 0.0
        %520 = vmatpush1.msra.mxu0 0.0
        %521 = vmatprep.subr.mxu0 0.0
        %522 = vmatpush1.msra.mxu0 0.0
        %523 = vmatprep.subr.mxu0 0.0
        %524 = vmatpush1.msra.mxu0 0.0
        %525 = vmatprep.subr.mxu0 0.0
        %526 = vmatpush1.msra.mxu0 0.0
        %527 = vmatprep.mubr.f32.mxu0 0.0
        %v528 = vand.u32 %v457, 4294901760
        %v529 = vsub.f32 %v457, %v528
        %v530 = vand.u32 %v529, 4294901760
        %v531 = vsub.f32 %v529, %v530
        %v532 = vand.u32 %v531, 4294901760
        %533 = vmatmul.mubr.f32.gmra.mrb[0].mxu0 %v532
        %v534 = vpop.f32.mrb[0].mxu0
        %v535 = vadd.f32 0.0, %v534
        %v536 = vpop.f32.mrb[0].mxu0
        %537 = vmatprep.mubr.f32.mxu0 0.0
        %v538 = vand.u32 %v460, 4294901760
        %v539 = vsub.f32 %v460, %v538
        %v540 = vand.u32 %v539, 4294901760
        %v541 = vsub.f32 %v539, %v540
        %v542 = vand.u32 %v541, 4294901760
        %543 = vmatmul.mubr.f32.gmra.mrb[0].mxu0 %v542
        %v544 = vpop.f32.mrb[0].mxu0
        %v545 = vadd.f32 0.0, %v544
        %v546 = vpop.f32.mrb[0].mxu0
        %547 = vdwg.mxu0
        %548 = vmatprep.subr.mxu0 0.0
        %v549 = vand.u32 %v454, 4294901760
        %v550 = vsub.f32 %v454, %v549
        %v551 = vand.u32 %v550, 4294901760
        %v552 = vsub.f32 %v550, %v551
        %v553 = vand.u32 %v552, 4294901760
        %554 = vmatpush1.msra.mxu0 %v553
        %555 = vmatprep.subr.mxu0 0.0
        %556 = vmatpush1.msra.mxu0 0.0
        %557 = vmatprep.subr.mxu0 0.0
        %558 = vmatpush1.msra.mxu0 0.0
        %559 = vmatprep.subr.mxu0 0.0
        %560 = vmatpush1.msra.mxu0 0.0
        %561 = vmatprep.subr.mxu0 0.0
        %562 = vmatpush1.msra.mxu0 0.0
        %563 = vmatprep.subr.mxu0 0.0
        %564 = vmatpush1.msra.mxu0 0.0
        %565 = vmatprep.subr.mxu0 0.0
        %566 = vmatpush1.msra.mxu0 0.0
        %567 = vmatprep.subr.mxu0 0.0
        %568 = vmatpush1.msra.mxu0 0.0
        %569 = vmatprep.subr.mxu0 0.0
        %570 = vmatpush1.msra.mxu0 0.0
        %571 = vmatprep.subr.mxu0 0.0
        %572 = vmatpush1.msra.mxu0 0.0
        %573 = vmatprep.subr.mxu0 0.0
        %574 = vmatpush1.msra.mxu0 0.0
        %575 = vmatprep.subr.mxu0 0.0
        %576 = vmatpush1.msra.mxu0 0.0
        %577 = vmatprep.subr.mxu0 0.0
        %578 = vmatpush1.msra.mxu0 0.0
        %579 = vmatprep.subr.mxu0 0.0
        %580 = vmatpush1.msra.mxu0 0.0
        %581 = vmatprep.subr.mxu0 0.0
        %582 = vmatpush1.msra.mxu0 0.0
        %583 = vmatprep.subr.mxu0 0.0
        %584 = vmatpush1.msra.mxu0 0.0
        %585 = vmatprep.subr.mxu0 0.0
        %586 = vmatpush1.msra.mxu0 0.0
        %587 = vmatprep.subr.mxu0 0.0
        %588 = vmatpush1.msra.mxu0 0.0
        %589 = vmatprep.subr.mxu0 0.0
        %590 = vmatpush1.msra.mxu0 0.0
        %591 = vmatprep.subr.mxu0 0.0
        %592 = vmatpush1.msra.mxu0 0.0
        %593 = vmatprep.subr.mxu0 0.0
        %594 = vmatpush1.msra.mxu0 0.0
        %595 = vmatprep.subr.mxu0 0.0
        %596 = vmatpush1.msra.mxu0 0.0
        %597 = vmatprep.subr.mxu0 0.0
        %598 = vmatpush1.msra.mxu0 0.0
        %599 = vmatprep.subr.mxu0 0.0
        %600 = vmatpush1.msra.mxu0 0.0
        %601 = vmatprep.subr.mxu0 0.0
        %602 = vmatpush1.msra.mxu0 0.0
        %603 = vmatprep.subr.mxu0 0.0
        %604 = vmatpush1.msra.mxu0 0.0
        %605 = vmatprep.subr.mxu0 0.0
        %606 = vmatpush1.msra.mxu0 0.0
        %607 = vmatprep.subr.mxu0 0.0
        %608 = vmatpush1.msra.mxu0 0.0
        %609 = vmatprep.subr.mxu0 0.0
        %610 = vmatpush1.msra.mxu0 0.0
        %611 = vmatprep.subr.mxu0 0.0
        %612 = vmatpush1.msra.mxu0 0.0
        %613 = vmatprep.subr.mxu0 0.0
        %614 = vmatpush1.msra.mxu0 0.0
        %615 = vmatprep.subr.mxu0 0.0
        %616 = vmatpush1.msra.mxu0 0.0
        %617 = vmatprep.mubr.f32.mxu0 0.0
        %v618 = vand.u32 %v457, 4294901760
        %619 = vmatmul.mubr.f32.gmra.mrb[0].mxu0 %v618
        %v620 = vpop.f32.mrb[0].mxu0
        %v621 = vadd.f32 %v535, %v620
        %v622 = vpop.f32.mrb[0].mxu0
        %623 = vmatprep.mubr.f32.mxu0 0.0
        %v624 = vand.u32 %v460, 4294901760
        %625 = vmatmul.mubr.f32.gmra.mrb[0].mxu0 %v624
        %v626 = vpop.f32.mrb[0].mxu0
        %v627 = vadd.f32 %v545, %v626
        %v628 = vpop.f32.mrb[0].mxu0
        %629 = vdwg.mxu0
        %630 = vmatprep.subr.mxu0 0.0
        %v631 = vand.u32 %v454, 4294901760
        %v632 = vsub.f32 %v454, %v631
        %633 = vmatpush1.msra.mxu0 %v632
        %634 = vmatprep.subr.mxu0 0.0
        %635 = vmatpush1.msra.mxu0 0.0
        %636 = vmatprep.subr.mxu0 0.0
        %637 = vmatpush1.msra.mxu0 0.0
        %638 = vmatprep.subr.mxu0 0.0
        %639 = vmatpush1.msra.mxu0 0.0
        %640 = vmatprep.subr.mxu0 0.0
        %641 = vmatpush1.msra.mxu0 0.0
        %642 = vmatprep.subr.mxu0 0.0
        %643 = vmatpush1.msra.mxu0 0.0
        %644 = vmatprep.subr.mxu0 0.0
        %645 = vmatpush1.msra.mxu0 0.0
        %646 = vmatprep.subr.mxu0 0.0
        %647 = vmatpush1.msra.mxu0 0.0
        %648 = vmatprep.subr.mxu0 0.0
        %649 = vmatpush1.msra.mxu0 0.0
        %650 = vmatprep.subr.mxu0 0.0
        %651 = vmatpush1.msra.mxu0 0.0
        %652 = vmatprep.subr.mxu0 0.0
        %653 = vmatpush1.msra.mxu0 0.0
        %654 = vmatprep.subr.mxu0 0.0
        %655 = vmatpush1.msra.mxu0 0.0
        %656 = vmatprep.subr.mxu0 0.0
        %657 = vmatpush1.msra.mxu0 0.0
        %658 = vmatprep.subr.mxu0 0.0
        %659 = vmatpush1.msra.mxu0 0.0
        %660 = vmatprep.subr.mxu0 0.0
        %661 = vmatpush1.msra.mxu0 0.0
        %662 = vmatprep.subr.mxu0 0.0
        %663 = vmatpush1.msra.mxu0 0.0
        %664 = vmatprep.subr.mxu0 0.0
        %665 = vmatpush1.msra.mxu0 0.0
        %666 = vmatprep.subr.mxu0 0.0
        %667 = vmatpush1.msra.mxu0 0.0
        %668 = vmatprep.subr.mxu0 0.0
        %669 = vmatpush1.msra.mxu0 0.0
        %670 = vmatprep.subr.mxu0 0.0
        %671 = vmatpush1.msra.mxu0 0.0
        %672 = vmatprep.subr.mxu0 0.0
        %673 = vmatpush1.msra.mxu0 0.0
        %674 = vmatprep.subr.mxu0 0.0
        %675 = vmatpush1.msra.mxu0 0.0
        %676 = vmatprep.subr.mxu0 0.0
        %677 = vmatpush1.msra.mxu0 0.0
        %678 = vmatprep.subr.mxu0 0.0
        %679 = vmatpush1.msra.mxu0 0.0
        %680 = vmatprep.subr.mxu0 0.0
        %681 = vmatpush1.msra.mxu0 0.0
        %682 = vmatprep.subr.mxu0 0.0
        %683 = vmatpush1.msra.mxu0 0.0
        %684 = vmatprep.subr.mxu0 0.0
        %685 = vmatpush1.msra.mxu0 0.0
        %686 = vmatprep.subr.mxu0 0.0
        %687 = vmatpush1.msra.mxu0 0.0
        %688 = vmatprep.subr.mxu0 0.0
        %689 = vmatpush1.msra.mxu0 0.0
        %690 = vmatprep.subr.mxu0 0.0
        %691 = vmatpush1.msra.mxu0 0.0
        %692 = vmatprep.subr.mxu0 0.0
        %693 = vmatpush1.msra.mxu0 0.0
        %694 = vmatprep.subr.mxu0 0.0
        %695 = vmatpush1.msra.mxu0 0.0
        %696 = vmatprep.mubr.f32.mxu0 0.0
        %v697 = vand.u32 %v457, 4294901760
        %v698 = vsub.f32 %v457, %v697
        %699 = vmatmul.mubr.f32.gmra.mrb[0].mxu0 %v698
        %v700 = vpop.f32.mrb[0].mxu0
        %v701 = vadd.f32 %v621, %v700
        %v702 = vpop.f32.mrb[0].mxu0
        %703 = vmatprep.mubr.f32.mxu0 0.0
        %v704 = vand.u32 %v460, 4294901760
        %v705 = vsub.f32 %v460, %v704
        %706 = vmatmul.mubr.f32.gmra.mrb[0].mxu0 %v705
        %v707 = vpop.f32.mrb[0].mxu0
        %v708 = vadd.f32 %v627, %v707
        %v709 = vpop.f32.mrb[0].mxu0
        %710 = vdwg.mxu0
        %711 = vmatprep.subr.mxu0 0.0
        %v712 = vand.u32 %v454, 4294901760
        %713 = vmatpush1.msra.mxu0 %v712
        %714 = vmatprep.subr.mxu0 0.0
        %715 = vmatpush1.msra.mxu0 0.0
        %716 = vmatprep.subr.mxu0 0.0
        %717 = vmatpush1.msra.mxu0 0.0
        %718 = vmatprep.subr.mxu0 0.0
        %719 = vmatpush1.msra.mxu0 0.0
        %720 = vmatprep.subr.mxu0 0.0
        %721 = vmatpush1.msra.mxu0 0.0
        %722 = vmatprep.subr.mxu0 0.0
        %723 = vmatpush1.msra.mxu0 0.0
        %724 = vmatprep.subr.mxu0 0.0
        %725 = vmatpush1.msra.mxu0 0.0
        %726 = vmatprep.subr.mxu0 0.0
        %727 = vmatpush1.msra.mxu0 0.0
        %728 = vmatprep.subr.mxu0 0.0
        %729 = vmatpush1.msra.mxu0 0.0
        %730 = vmatprep.subr.mxu0 0.0
        %731 = vmatpush1.msra.mxu0 0.0
        %732 = vmatprep.subr.mxu0 0.0
        %733 = vmatpush1.msra.mxu0 0.0
        %734 = vmatprep.subr.mxu0 0.0
        %735 = vmatpush1.msra.mxu0 0.0
        %736 = vmatprep.subr.mxu0 0.0
        %737 = vmatpush1.msra.mxu0 0.0
        %738 = vmatprep.subr.mxu0 0.0
        %739 = vmatpush1.msra.mxu0 0.0
        %740 = vmatprep.subr.mxu0 0.0
        %741 = vmatpush1.msra.mxu0 0.0
        %742 = vmatprep.subr.mxu0 0.0
        %743 = vmatpush1.msra.mxu0 0.0
        %744 = vmatprep.subr.mxu0 0.0
        %745 = vmatpush1.msra.mxu0 0.0
        %746 = vmatprep.subr.mxu0 0.0
        %747 = vmatpush1.msra.mxu0 0.0
        %748 = vmatprep.subr.mxu0 0.0
        %749 = vmatpush1.msra.mxu0 0.0
        %750 = vmatprep.subr.mxu0 0.0
        %751 = vmatpush1.msra.mxu0 0.0
        %752 = vmatprep.subr.mxu0 0.0
        %753 = vmatpush1.msra.mxu0 0.0
        %754 = vmatprep.subr.mxu0 0.0
        %755 = vmatpush1.msra.mxu0 0.0
        %756 = vmatprep.subr.mxu0 0.0
        %757 = vmatpush1.msra.mxu0 0.0
        %758 = vmatprep.subr.mxu0 0.0
        %759 = vmatpush1.msra.mxu0 0.0
        %760 = vmatprep.subr.mxu0 0.0
        %761 = vmatpush1.msra.mxu0 0.0
        %762 = vmatprep.subr.mxu0 0.0
        %763 = vmatpush1.msra.mxu0 0.0
        %764 = vmatprep.subr.mxu0 0.0
        %765 = vmatpush1.msra.mxu0 0.0
        %766 = vmatprep.subr.mxu0 0.0
        %767 = vmatpush1.msra.mxu0 0.0
        %768 = vmatprep.subr.mxu0 0.0
        %769 = vmatpush1.msra.mxu0 0.0
        %770 = vmatprep.subr.mxu0 0.0
        %771 = vmatpush1.msra.mxu0 0.0
        %772 = vmatprep.subr.mxu0 0.0
        %773 = vmatpush1.msra.mxu0 0.0
        %774 = vmatprep.subr.mxu0 0.0
        %775 = vmatpush1.msra.mxu0 0.0
        %776 = vmatprep.mubr.f32.mxu0 0.0
        %v777 = vand.u32 %v457, 4294901760
        %v778 = vsub.f32 %v457, %v777
        %v779 = vand.u32 %v778, 4294901760
        %780 = vmatmul.mubr.f32.gmra.mrb[0].mxu0 %v779
        %v781 = vpop.f32.mrb[0].mxu0
        %v782 = vadd.f32 %v701, %v781
        %v783 = vpop.f32.mrb[0].mxu0
        %784 = vmatprep.mubr.f32.mxu0 0.0
        %v785 = vand.u32 %v460, 4294901760
        %v786 = vsub.f32 %v460, %v785
        %v787 = vand.u32 %v786, 4294901760
        %788 = vmatmul.mubr.f32.gmra.mrb[0].mxu0 %v787
        %v789 = vpop.f32.mrb[0].mxu0
        %v790 = vadd.f32 %v708, %v789
        %v791 = vpop.f32.mrb[0].mxu0
        %792 = vdwg.mxu0
        %793 = vmatprep.subr.mxu0 0.0
        %v794 = vand.u32 %v454, 4294901760
        %v795 = vsub.f32 %v454, %v794
        %v796 = vand.u32 %v795, 4294901760
        %797 = vmatpush1.msra.mxu0 %v796
        %798 = vmatprep.subr.mxu0 0.0
        %799 = vmatpush1.msra.mxu0 0.0
        %800 = vmatprep.subr.mxu0 0.0
        %801 = vmatpush1.msra.mxu0 0.0
        %802 = vmatprep.subr.mxu0 0.0
        %803 = vmatpush1.msra.mxu0 0.0
        %804 = vmatprep.subr.mxu0 0.0
        %805 = vmatpush1.msra.mxu0 0.0
        %806 = vmatprep.subr.mxu0 0.0
        %807 = vmatpush1.msra.mxu0 0.0
        %808 = vmatprep.subr.mxu0 0.0
        %809 = vmatpush1.msra.mxu0 0.0
        %810 = vmatprep.subr.mxu0 0.0
        %811 = vmatpush1.msra.mxu0 0.0
        %812 = vmatprep.subr.mxu0 0.0
        %813 = vmatpush1.msra.mxu0 0.0
        %814 = vmatprep.subr.mxu0 0.0
        %815 = vmatpush1.msra.mxu0 0.0
        %816 = vmatprep.subr.mxu0 0.0
        %817 = vmatpush1.msra.mxu0 0.0
        %818 = vmatprep.subr.mxu0 0.0
        %819 = vmatpush1.msra.mxu0 0.0
        %820 = vmatprep.subr.mxu0 0.0
        %821 = vmatpush1.msra.mxu0 0.0
        %822 = vmatprep.subr.mxu0 0.0
        %823 = vmatpush1.msra.mxu0 0.0
        %824 = vmatprep.subr.mxu0 0.0
        %825 = vmatpush1.msra.mxu0 0.0
        %826 = vmatprep.subr.mxu0 0.0
        %827 = vmatpush1.msra.mxu0 0.0
        %828 = vmatprep.subr.mxu0 0.0
        %829 = vmatpush1.msra.mxu0 0.0
        %830 = vmatprep.subr.mxu0 0.0
        %831 = vmatpush1.msra.mxu0 0.0
        %832 = vmatprep.subr.mxu0 0.0
        %833 = vmatpush1.msra.mxu0 0.0
        %834 = vmatprep.subr.mxu0 0.0
        %835 = vmatpush1.msra.mxu0 0.0
        %836 = vmatprep.subr.mxu0 0.0
        %837 = vmatpush1.msra.mxu0 0.0
        %838 = vmatprep.subr.mxu0 0.0
        %839 = vmatpush1.msra.mxu0 0.0
        %840 = vmatprep.subr.mxu0 0.0
        %841 = vmatpush1.msra.mxu0 0.0
        %842 = vmatprep.subr.mxu0 0.0
        %843 = vmatpush1.msra.mxu0 0.0
        %844 = vmatprep.subr.mxu0 0.0
        %845 = vmatpush1.msra.mxu0 0.0
        %846 = vmatprep.subr.mxu0 0.0
        %847 = vmatpush1.msra.mxu0 0.0
        %848 = vmatprep.subr.mxu0 0.0
        %849 = vmatpush1.msra.mxu0 0.0
        %850 = vmatprep.subr.mxu0 0.0
        %851 = vmatpush1.msra.mxu0 0.0
        %852 = vmatprep.subr.mxu0 0.0
        %853 = vmatpush1.msra.mxu0 0.0
        %854 = vmatprep.subr.mxu0 0.0
        %855 = vmatpush1.msra.mxu0 0.0
        %856 = vmatprep.subr.mxu0 0.0
        %857 = vmatpush1.msra.mxu0 0.0
        %858 = vmatprep.subr.mxu0 0.0
        %859 = vmatpush1.msra.mxu0 0.0
        %860 = vmatprep.mubr.f32.mxu0 0.0
        %v861 = vand.u32 %v457, 4294901760
        %862 = vmatmul.mubr.f32.gmra.mrb[0].mxu0 %v861
        %v863 = vpop.f32.mrb[0].mxu0
        %v864 = vadd.f32 %v782, %v863
        %v865 = vpop.f32.mrb[0].mxu0
        %866 = vmatprep.mubr.f32.mxu0 0.0
        %v867 = vand.u32 %v460, 4294901760
        %868 = vmatmul.mubr.f32.gmra.mrb[0].mxu0 %v867
        %v869 = vpop.f32.mrb[0].mxu0
        %v870 = vadd.f32 %v790, %v869
        %v871 = vpop.f32.mrb[0].mxu0
        %872 = vdwg.mxu0
        %873 = vmatprep.subr.mxu0 0.0
        %v874 = vand.u32 %v454, 4294901760
        %875 = vmatpush1.msra.mxu0 %v874
        %876 = vmatprep.subr.mxu0 0.0
        %877 = vmatpush1.msra.mxu0 0.0
        %878 = vmatprep.subr.mxu0 0.0
        %879 = vmatpush1.msra.mxu0 0.0
        %880 = vmatprep.subr.mxu0 0.0
        %881 = vmatpush1.msra.mxu0 0.0
        %882 = vmatprep.subr.mxu0 0.0
        %883 = vmatpush1.msra.mxu0 0.0
        %884 = vmatprep.subr.mxu0 0.0
        %885 = vmatpush1.msra.mxu0 0.0
        %886 = vmatprep.subr.mxu0 0.0
        %887 = vmatpush1.msra.mxu0 0.0
        %888 = vmatprep.subr.mxu0 0.0
        %889 = vmatpush1.msra.mxu0 0.0
        %890 = vmatprep.subr.mxu0 0.0
        %891 = vmatpush1.msra.mxu0 0.0
        %892 = vmatprep.subr.mxu0 0.0
        %893 = vmatpush1.msra.mxu0 0.0
        %894 = vmatprep.subr.mxu0 0.0
        %895 = vmatpush1.msra.mxu0 0.0
        %896 = vmatprep.subr.mxu0 0.0
        %897 = vmatpush1.msra.mxu0 0.0
        %898 = vmatprep.subr.mxu0 0.0
        %899 = vmatpush1.msra.mxu0 0.0
        %900 = vmatprep.subr.mxu0 0.0
        %901 = vmatpush1.msra.mxu0 0.0
        %902 = vmatprep.subr.mxu0 0.0
        %903 = vmatpush1.msra.mxu0 0.0
        %904 = vmatprep.subr.mxu0 0.0
        %905 = vmatpush1.msra.mxu0 0.0
        %906 = vmatprep.subr.mxu0 0.0
        %907 = vmatpush1.msra.mxu0 0.0
        %908 = vmatprep.subr.mxu0 0.0
        %909 = vmatpush1.msra.mxu0 0.0
        %910 = vmatprep.subr.mxu0 0.0
        %911 = vmatpush1.msra.mxu0 0.0
        %912 = vmatprep.subr.mxu0 0.0
        %913 = vmatpush1.msra.mxu0 0.0
        %914 = vmatprep.subr.mxu0 0.0
        %915 = vmatpush1.msra.mxu0 0.0
        %916 = vmatprep.subr.mxu0 0.0
        %917 = vmatpush1.msra.mxu0 0.0
        %918 = vmatprep.subr.mxu0 0.0
        %919 = vmatpush1.msra.mxu0 0.0
        %920 = vmatprep.subr.mxu0 0.0
        %921 = vmatpush1.msra.mxu0 0.0
        %922 = vmatprep.subr.mxu0 0.0
        %923 = vmatpush1.msra.mxu0 0.0
        %924 = vmatprep.subr.mxu0 0.0
        %925 = vmatpush1.msra.mxu0 0.0
        %926 = vmatprep.subr.mxu0 0.0
        %927 = vmatpush1.msra.mxu0 0.0
        %928 = vmatprep.subr.mxu0 0.0
        %929 = vmatpush1.msra.mxu0 0.0
        %930 = vmatprep.subr.mxu0 0.0
        %931 = vmatpush1.msra.mxu0 0.0
        %932 = vmatprep.subr.mxu0 0.0
        %933 = vmatpush1.msra.mxu0 0.0
        %934 = vmatprep.subr.mxu0 0.0
        %935 = vmatpush1.msra.mxu0 0.0
        %936 = vmatprep.subr.mxu0 0.0
        %937 = vmatpush1.msra.mxu0 0.0
        %938 = vmatprep.mubr.f32.mxu0 0.0
        %v939 = vand.u32 %v457, 4294901760
        %940 = vmatmul.mubr.f32.gmra.mrb[0].mxu0 %v939
        %v941 = vpop.f32.mrb[0].mxu0
        %v942 = vadd.f32 %v864, %v941
        %v943 = vpop.f32.mrb[0].mxu0
        %944 = vmatprep.mubr.f32.mxu0 0.0
        %v945 = vand.u32 %v460, 4294901760
        %946 = vmatmul.mubr.f32.gmra.mrb[0].mxu0 %v945
        %v947 = vpop.f32.mrb[0].mxu0
        %v948 = vadd.f32 %v870, %v947
        %v949 = vpop.f32.mrb[0].mxu0
        %950 = vdwg.mxu0
        %vm951 = vcmp.le.f32.partialorder %v942, 0.0
        %vm952 = vcmp.le.f32.partialorder %v948, 0.0
        %v953 = vld [vmem:[%s381] sm:$0xff]
        %v954 = vld [vmem:[%s381 + $0x8] sm:$0xff]
        %v955 = vld [vmem:[#allocation10] sm:$0xff]
        %v956 = vld [vmem:[#allocation10 + $0x8] sm:$0xff]
        %v957 = vld [vmem:[#allocation10 + $0x10] sm:$0xff]
        %v958 = vld [vmem:[#allocation10 + $0x18] sm:$0xff]
        %v959 = vld [vmem:[#allocation10 + $0x20] sm:$0xff]
        %vm960 = vcmask 326656
        %v962 = vsel %vm960, %v953, 0
        %v965 = vsel %vm960, %v954, 0
        %967 = vmatprep.subr.mxu0 0.0
        %v968 = vand.u32 %v955, 4294901760
        %969 = vmatpush1.msra.mxu0 %v968
        %970 = vmatprep.subr.mxu0 0.0
        %v971 = vand.u32 %v956, 4294901760
        %972 = vmatpush1.msra.mxu0 %v971
        %973 = vmatprep.subr.mxu0 0.0
        %v974 = vand.u32 %v957, 4294901760
        %975 = vmatpush1.msra.mxu0 %v974
        %976 = vmatprep.subr.mxu0 0.0
        %v977 = vand.u32 %v958, 4294901760
        %978 = vmatpush1.msra.mxu0 %v977
        %979 = vmatprep.subr.mxu0 0.0
        %v980 = vand.u32 %v959, 4294901760
        %981 = vmatpush1.msra.mxu0 %v980
        %982 = vmatprep.subr.mxu0 0.0
        %983 = vmatpush1.msra.mxu0 0.0
        %984 = vmatprep.subr.mxu0 0.0
        %985 = vmatpush1.msra.mxu0 0.0
        %986 = vmatprep.subr.mxu0 0.0
        %987 = vmatpush1.msra.mxu0 0.0
        %988 = vmatprep.subr.mxu0 0.0
        %989 = vmatpush1.msra.mxu0 0.0
        %990 = vmatprep.subr.mxu0 0.0
        %991 = vmatpush1.msra.mxu0 0.0
        %992 = vmatprep.subr.mxu0 0.0
        %993 = vmatpush1.msra.mxu0 0.0
        %994 = vmatprep.subr.mxu0 0.0
        %995 = vmatpush1.msra.mxu0 0.0
        %996 = vmatprep.subr.mxu0 0.0
        %997 = vmatpush1.msra.mxu0 0.0
        %998 = vmatprep.subr.mxu0 0.0
        %999 = vmatpush1.msra.mxu0 0.0
        %1000 = vmatprep.subr.mxu0 0.0
        %1001 = vmatpush1.msra.mxu0 0.0
        %1002 = vmatprep.subr.mxu0 0.0
        %1003 = vmatpush1.msra.mxu0 0.0
        %1004 = vmatprep.subr.mxu0 0.0
        %1005 = vmatpush1.msra.mxu0 0.0
        %1006 = vmatprep.subr.mxu0 0.0
        %1007 = vmatpush1.msra.mxu0 0.0
        %1008 = vmatprep.subr.mxu0 0.0
        %1009 = vmatpush1.msra.mxu0 0.0
        %1010 = vmatprep.subr.mxu0 0.0
        %1011 = vmatpush1.msra.mxu0 0.0
        %1012 = vmatprep.subr.mxu0 0.0
        %1013 = vmatpush1.msra.mxu0 0.0
        %1014 = vmatprep.subr.mxu0 0.0
        %1015 = vmatpush1.msra.mxu0 0.0
        %1016 = vmatprep.subr.mxu0 0.0
        %1017 = vmatpush1.msra.mxu0 0.0
        %1018 = vmatprep.subr.mxu0 0.0
        %1019 = vmatpush1.msra.mxu0 0.0
        %1020 = vmatprep.subr.mxu0 0.0
        %1021 = vmatpush1.msra.mxu0 0.0
        %1022 = vmatprep.subr.mxu0 0.0
        %1023 = vmatpush1.msra.mxu0 0.0
        %1024 = vmatprep.subr.mxu0 0.0
        %1025 = vmatpush1.msra.mxu0 0.0
        %1026 = vmatprep.subr.mxu0 0.0
        %1027 = vmatpush1.msra.mxu0 0.0
        %1028 = vmatprep.subr.mxu0 0.0
        %1029 = vmatpush1.msra.mxu0 0.0
        %1030 = vmatprep.subr.mxu0 0.0
        %1031 = vmatpush1.msra.mxu0 0.0
        %1032 = vmatprep.subr.mxu0 0.0
        %1033 = vmatpush1.msra.mxu0 0.0
        %1034 = vmatprep.subr.mxu0 0.0
        %1035 = vmatpush1.msra.mxu0 0.0
        %1036 = vmatprep.mubr.f32.mxu0 0.0
        %v1037 = vand.u32 %v962, 4294901760
        %v1038 = vsub.f32 %v962, %v1037
        %v1039 = vand.u32 %v1038, 4294901760
        %v1040 = vsub.f32 %v1038, %v1039
        %v1041 = vand.u32 %v1040, 4294901760
        %1042 = vmatmul.mubr.f32.gmra.mrb[0].mxu0 %v1041
        %v1043 = vpop.f32.mrb[0].mxu0
        %v1044 = vadd.f32 0.0, %v1043
        %v1045 = vpop.f32.mrb[0].mxu0
        %1046 = vmatprep.mubr.f32.mxu0 0.0
        %v1047 = vand.u32 %v965, 4294901760
        %v1048 = vsub.f32 %v965, %v1047
        %v1049 = vand.u32 %v1048, 4294901760
        %v1050 = vsub.f32 %v1048, %v1049
        %v1051 = vand.u32 %v1050, 4294901760
        %1052 = vmatmul.mubr.f32.gmra.mrb[0].mxu0 %v1051
        %v1053 = vpop.f32.mrb[0].mxu0
        %v1054 = vadd.f32 0.0, %v1053
        %v1055 = vpop.f32.mrb[0].mxu0
        %1056 = vdwg.mxu0
        %1057 = vmatprep.subr.mxu0 0.0
        %v1058 = vand.u32 %v955, 4294901760
        %v1059 = vsub.f32 %v955, %v1058
        %v1060 = vand.u32 %v1059, 4294901760
        %v1061 = vsub.f32 %v1059, %v1060
        %v1062 = vand.u32 %v1061, 4294901760
        %1063 = vmatpush1.msra.mxu0 %v1062
        %1064 = vmatprep.subr.mxu0 0.0
        %v1065 = vand.u32 %v956, 4294901760
        %v1066 = vsub.f32 %v956, %v1065
        %v1067 = vand.u32 %v1066, 4294901760
        %v1068 = vsub.f32 %v1066, %v1067
        %v1069 = vand.u32 %v1068, 4294901760
        %1070 = vmatpush1.msra.mxu0 %v1069
        %1071 = vmatprep.subr.mxu0 0.0
        %v1072 = vand.u32 %v957, 4294901760
        %v1073 = vsub.f32 %v957, %v1072
        %v1074 = vand.u32 %v1073, 4294901760
        %v1075 = vsub.f32 %v1073, %v1074
        %v1076 = vand.u32 %v1075, 4294901760
        %1077 = vmatpush1.msra.mxu0 %v1076
        %1078 = vmatprep.subr.mxu0 0.0
        %v1079 = vand.u32 %v958, 4294901760
        %v1080 = vsub.f32 %v958, %v1079
        %v1081 = vand.u32 %v1080, 4294901760
        %v1082 = vsub.f32 %v1080, %v1081
        %v1083 = vand.u32 %v1082, 4294901760
        %1084 = vmatpush1.msra.mxu0 %v1083
        %1085 = vmatprep.subr.mxu0 0.0
        %v1086 = vand.u32 %v959, 4294901760
        %v1087 = vsub.f32 %v959, %v1086
        %v1088 = vand.u32 %v1087, 4294901760
        %v1089 = vsub.f32 %v1087, %v1088
        %v1090 = vand.u32 %v1089, 4294901760
        %1091 = vmatpush1.msra.mxu0 %v1090
        %1092 = vmatprep.subr.mxu0 0.0
        %1093 = vmatpush1.msra.mxu0 0.0
        %1094 = vmatprep.subr.mxu0 0.0
        %1095 = vmatpush1.msra.mxu0 0.0
        %1096 = vmatprep.subr.mxu0 0.0
        %1097 = vmatpush1.msra.mxu0 0.0
        %1098 = vmatprep.subr.mxu0 0.0
        %1099 = vmatpush1.msra.mxu0 0.0
        %1100 = vmatprep.subr.mxu0 0.0
        %1101 = vmatpush1.msra.mxu0 0.0
        %1102 = vmatprep.subr.mxu0 0.0
        %1103 = vmatpush1.msra.mxu0 0.0
        %1104 = vmatprep.subr.mxu0 0.0
        %1105 = vmatpush1.msra.mxu0 0.0
        %1106 = vmatprep.subr.mxu0 0.0
        %1107 = vmatpush1.msra.mxu0 0.0
        %1108 = vmatprep.subr.mxu0 0.0
        %1109 = vmatpush1.msra.mxu0 0.0
        %1110 = vmatprep.subr.mxu0 0.0
        %1111 = vmatpush1.msra.mxu0 0.0
        %1112 = vmatprep.subr.mxu0 0.0
        %1113 = vmatpush1.msra.mxu0 0.0
        %1114 = vmatprep.subr.mxu0 0.0
        %1115 = vmatpush1.msra.mxu0 0.0
        %1116 = vmatprep.subr.mxu0 0.0
        %1117 = vmatpush1.msra.mxu0 0.0
        %1118 = vmatprep.subr.mxu0 0.0
        %1119 = vmatpush1.msra.mxu0 0.0
        %1120 = vmatprep.subr.mxu0 0.0
        %1121 = vmatpush1.msra.mxu0 0.0
        %1122 = vmatprep.subr.mxu0 0.0
        %1123 = vmatpush1.msra.mxu0 0.0
        %1124 = vmatprep.subr.mxu0 0.0
        %1125 = vmatpush1.msra.mxu0 0.0
        %1126 = vmatprep.subr.mxu0 0.0
        %1127 = vmatpush1.msra.mxu0 0.0
        %1128 = vmatprep.subr.mxu0 0.0
        %1129 = vmatpush1.msra.mxu0 0.0
        %1130 = vmatprep.subr.mxu0 0.0
        %1131 = vmatpush1.msra.mxu0 0.0
        %1132 = vmatprep.subr.mxu0 0.0
        %1133 = vmatpush1.msra.mxu0 0.0
        %1134 = vmatprep.subr.mxu0 0.0
        %1135 = vmatpush1.msra.mxu0 0.0
        %1136 = vmatprep.subr.mxu0 0.0
        %1137 = vmatpush1.msra.mxu0 0.0
        %1138 = vmatprep.subr.mxu0 0.0
        %1139 = vmatpush1.msra.mxu0 0.0
        %1140 = vmatprep.subr.mxu0 0.0
        %1141 = vmatpush1.msra.mxu0 0.0
        %1142 = vmatprep.subr.mxu0 0.0
        %1143 = vmatpush1.msra.mxu0 0.0
        %1144 = vmatprep.subr.mxu0 0.0
        %1145 = vmatpush1.msra.mxu0 0.0
        %1146 = vmatprep.mubr.f32.mxu0 0.0
        %v1147 = vand.u32 %v962, 4294901760
        %1148 = vmatmul.mubr.f32.gmra.mrb[0].mxu0 %v1147
        %v1149 = vpop.f32.mrb[0].mxu0
        %v1150 = vadd.f32 %v1044, %v1149
        %v1151 = vpop.f32.mrb[0].mxu0
        %1152 = vmatprep.mubr.f32.mxu0 0.0
        %v1153 = vand.u32 %v965, 4294901760
        %1154 = vmatmul.mubr.f32.gmra.mrb[0].mxu0 %v1153
        %v1155 = vpop.f32.mrb[0].mxu0
        %v1156 = vadd.f32 %v1054, %v1155
        %v1157 = vpop.f32.mrb[0].mxu0
        %1158 = vdwg.mxu0
        %1159 = vmatprep.subr.mxu0 0.0
        %v1160 = vand.u32 %v955, 4294901760
        %v1161 = vsub.f32 %v955, %v1160
        %1162 = vmatpush1.msra.mxu0 %v1161
        %1163 = vmatprep.subr.mxu0 0.0
        %v1164 = vand.u32 %v956, 4294901760
        %v1165 = vsub.f32 %v956, %v1164
        %1166 = vmatpush1.msra.mxu0 %v1165
        %1167 = vmatprep.subr.mxu0 0.0
        %v1168 = vand.u32 %v957, 4294901760
        %v1169 = vsub.f32 %v957, %v1168
        %1170 = vmatpush1.msra.mxu0 %v1169
        %1171 = vmatprep.subr.mxu0 0.0
        %v1172 = vand.u32 %v958, 4294901760
        %v1173 = vsub.f32 %v958, %v1172
        %1174 = vmatpush1.msra.mxu0 %v1173
        %1175 = vmatprep.subr.mxu0 0.0
        %v1176 = vand.u32 %v959, 4294901760
        %v1177 = vsub.f32 %v959, %v1176
        %1178 = vmatpush1.msra.mxu0 %v1177
        %1179 = vmatprep.subr.mxu0 0.0
        %1180 = vmatpush1.msra.mxu0 0.0
        %1181 = vmatprep.subr.mxu0 0.0
        %1182 = vmatpush1.msra.mxu0 0.0
        %1183 = vmatprep.subr.mxu0 0.0
        %1184 = vmatpush1.msra.mxu0 0.0
        %1185 = vmatprep.subr.mxu0 0.0
        %1186 = vmatpush1.msra.mxu0 0.0
        %1187 = vmatprep.subr.mxu0 0.0
        %1188 = vmatpush1.msra.mxu0 0.0
        %1189 = vmatprep.subr.mxu0 0.0
        %1190 = vmatpush1.msra.mxu0 0.0
        %1191 = vmatprep.subr.mxu0 0.0
        %1192 = vmatpush1.msra.mxu0 0.0
        %1193 = vmatprep.subr.mxu0 0.0
        %1194 = vmatpush1.msra.mxu0 0.0
        %1195 = vmatprep.subr.mxu0 0.0
        %1196 = vmatpush1.msra.mxu0 0.0
        %1197 = vmatprep.subr.mxu0 0.0
        %1198 = vmatpush1.msra.mxu0 0.0
        %1199 = vmatprep.subr.mxu0 0.0
        %1200 = vmatpush1.msra.mxu0 0.0
        %1201 = vmatprep.subr.mxu0 0.0
        %1202 = vmatpush1.msra.mxu0 0.0
        %1203 = vmatprep.subr.mxu0 0.0
        %1204 = vmatpush1.msra.mxu0 0.0
        %1205 = vmatprep.subr.mxu0 0.0
        %1206 = vmatpush1.msra.mxu0 0.0
        %1207 = vmatprep.subr.mxu0 0.0
        %1208 = vmatpush1.msra.mxu0 0.0
        %1209 = vmatprep.subr.mxu0 0.0
        %1210 = vmatpush1.msra.mxu0 0.0
        %1211 = vmatprep.subr.mxu0 0.0
        %1212 = vmatpush1.msra.mxu0 0.0
        %1213 = vmatprep.subr.mxu0 0.0
        %1214 = vmatpush1.msra.mxu0 0.0
        %1215 = vmatprep.subr.mxu0 0.0
        %1216 = vmatpush1.msra.mxu0 0.0
        %1217 = vmatprep.subr.mxu0 0.0
        %1218 = vmatpush1.msra.mxu0 0.0
        %1219 = vmatprep.subr.mxu0 0.0
        %1220 = vmatpush1.msra.mxu0 0.0
        %1221 = vmatprep.subr.mxu0 0.0
        %1222 = vmatpush1.msra.mxu0 0.0
        %1223 = vmatprep.subr.mxu0 0.0
        %1224 = vmatpush1.msra.mxu0 0.0
        %1225 = vmatprep.subr.mxu0 0.0
        %1226 = vmatpush1.msra.mxu0 0.0
        %1227 = vmatprep.subr.mxu0 0.0
        %1228 = vmatpush1.msra.mxu0 0.0
        %1229 = vmatprep.subr.mxu0 0.0
        %1230 = vmatpush1.msra.mxu0 0.0
        %1231 = vmatprep.subr.mxu0 0.0
        %1232 = vmatpush1.msra.mxu0 0.0
        %1233 = vmatprep.mubr.f32.mxu0 0.0
        %v1234 = vand.u32 %v962, 4294901760
        %v1235 = vsub.f32 %v962, %v1234
        %1236 = vmatmul.mubr.f32.gmra.mrb[0].mxu0 %v1235
        %v1237 = vpop.f32.mrb[0].mxu0
        %v1238 = vadd.f32 %v1150, %v1237
        %v1239 = vpop.f32.mrb[0].mxu0
        %1240 = vmatprep.mubr.f32.mxu0 0.0
        %v1241 = vand.u32 %v965, 4294901760
        %v1242 = vsub.f32 %v965, %v1241
        %1243 = vmatmul.mubr.f32.gmra.mrb[0].mxu0 %v1242
        %v1244 = vpop.f32.mrb[0].mxu0
        %v1245 = vadd.f32 %v1156, %v1244
        %v1246 = vpop.f32.mrb[0].mxu0
        %1247 = vdwg.mxu0
        %1248 = vmatprep.subr.mxu0 0.0
        %v1249 = vand.u32 %v955, 4294901760
        %1250 = vmatpush1.msra.mxu0 %v1249
        %1251 = vmatprep.subr.mxu0 0.0
        %v1252 = vand.u32 %v956, 4294901760
        %1253 = vmatpush1.msra.mxu0 %v1252
        %1254 = vmatprep.subr.mxu0 0.0
        %v1255 = vand.u32 %v957, 4294901760
        %1256 = vmatpush1.msra.mxu0 %v1255
        %1257 = vmatprep.subr.mxu0 0.0
        %v1258 = vand.u32 %v958, 4294901760
        %1259 = vmatpush1.msra.mxu0 %v1258
        %1260 = vmatprep.subr.mxu0 0.0
        %v1261 = vand.u32 %v959, 4294901760
        %1262 = vmatpush1.msra.mxu0 %v1261
        %1263 = vmatprep.subr.mxu0 0.0
        %1264 = vmatpush1.msra.mxu0 0.0
        %1265 = vmatprep.subr.mxu0 0.0
        %1266 = vmatpush1.msra.mxu0 0.0
        %1267 = vmatprep.subr.mxu0 0.0
        %1268 = vmatpush1.msra.mxu0 0.0
        %1269 = vmatprep.subr.mxu0 0.0
        %1270 = vmatpush1.msra.mxu0 0.0
        %1271 = vmatprep.subr.mxu0 0.0
        %1272 = vmatpush1.msra.mxu0 0.0
        %1273 = vmatprep.subr.mxu0 0.0
        %1274 = vmatpush1.msra.mxu0 0.0
        %1275 = vmatprep.subr.mxu0 0.0
        %1276 = vmatpush1.msra.mxu0 0.0
        %1277 = vmatprep.subr.mxu0 0.0
        %1278 = vmatpush1.msra.mxu0 0.0
        %1279 = vmatprep.subr.mxu0 0.0
        %1280 = vmatpush1.msra.mxu0 0.0
        %1281 = vmatprep.subr.mxu0 0.0
        %1282 = vmatpush1.msra.mxu0 0.0
        %1283 = vmatprep.subr.mxu0 0.0
        %1284 = vmatpush1.msra.mxu0 0.0
        %1285 = vmatprep.subr.mxu0 0.0
        %1286 = vmatpush1.msra.mxu0 0.0
        %1287 = vmatprep.subr.mxu0 0.0
        %1288 = vmatpush1.msra.mxu0 0.0
        %1289 = vmatprep.subr.mxu0 0.0
        %1290 = vmatpush1.msra.mxu0 0.0
        %1291 = vmatprep.subr.mxu0 0.0
        %1292 = vmatpush1.msra.mxu0 0.0
        %1293 = vmatprep.subr.mxu0 0.0
        %1294 = vmatpush1.msra.mxu0 0.0
        %1295 = vmatprep.subr.mxu0 0.0
        %1296 = vmatpush1.msra.mxu0 0.0
        %1297 = vmatprep.subr.mxu0 0.0
        %1298 = vmatpush1.msra.mxu0 0.0
        %1299 = vmatprep.subr.mxu0 0.0
        %1300 = vmatpush1.msra.mxu0 0.0
        %1301 = vmatprep.subr.mxu0 0.0
        %1302 = vmatpush1.msra.mxu0 0.0
        %1303 = vmatprep.subr.mxu0 0.0
        %1304 = vmatpush1.msra.mxu0 0.0
        %1305 = vmatprep.subr.mxu0 0.0
        %1306 = vmatpush1.msra.mxu0 0.0
        %1307 = vmatprep.subr.mxu0 0.0
        %1308 = vmatpush1.msra.mxu0 0.0
        %1309 = vmatprep.subr.mxu0 0.0
        %1310 = vmatpush1.msra.mxu0 0.0
        %1311 = vmatprep.subr.mxu0 0.0
        %1312 = vmatpush1.msra.mxu0 0.0
        %1313 = vmatprep.subr.mxu0 0.0
        %1314 = vmatpush1.msra.mxu0 0.0
        %1315 = vmatprep.subr.mxu0 0.0
        %1316 = vmatpush1.msra.mxu0 0.0
        %1317 = vmatprep.mubr.f32.mxu0 0.0
        %v1318 = vand.u32 %v962, 4294901760
        %v1319 = vsub.f32 %v962, %v1318
        %v1320 = vand.u32 %v1319, 4294901760
        %1321 = vmatmul.mubr.f32.gmra.mrb[0].mxu0 %v1320
        %v1322 = vpop.f32.mrb[0].mxu0
        %v1323 = vadd.f32 %v1238, %v1322
        %v1324 = vpop.f32.mrb[0].mxu0
        %1325 = vmatprep.mubr.f32.mxu0 0.0
        %v1326 = vand.u32 %v965, 4294901760
        %v1327 = vsub.f32 %v965, %v1326
        %v1328 = vand.u32 %v1327, 4294901760
        %1329 = vmatmul.mubr.f32.gmra.mrb[0].mxu0 %v1328
        %v1330 = vpop.f32.mrb[0].mxu0
        %v1331 = vadd.f32 %v1245, %v1330
        %v1332 = vpop.f32.mrb[0].mxu0
        %1333 = vdwg.mxu0
        %1334 = vmatprep.subr.mxu0 0.0
        %v1335 = vand.u32 %v955, 4294901760
        %v1336 = vsub.f32 %v955, %v1335
        %v1337 = vand.u32 %v1336, 4294901760
        %1338 = vmatpush1.msra.mxu0 %v1337
        %1339 = vmatprep.subr.mxu0 0.0
        %v1340 = vand.u32 %v956, 4294901760
        %v1341 = vsub.f32 %v956, %v1340
        %v1342 = vand.u32 %v1341, 4294901760
        %1343 = vmatpush1.msra.mxu0 %v1342
        %1344 = vmatprep.subr.mxu0 0.0
        %v1345 = vand.u32 %v957, 4294901760
        %v1346 = vsub.f32 %v957, %v1345
        %v1347 = vand.u32 %v1346, 4294901760
        %1348 = vmatpush1.msra.mxu0 %v1347
        %1349 = vmatprep.subr.mxu0 0.0
        %v1350 = vand.u32 %v958, 4294901760
        %v1351 = vsub.f32 %v958, %v1350
        %v1352 = vand.u32 %v1351, 4294901760
        %1353 = vmatpush1.msra.mxu0 %v1352
        %1354 = vmatprep.subr.mxu0 0.0
        %v1355 = vand.u32 %v959, 4294901760
        %v1356 = vsub.f32 %v959, %v1355
        %v1357 = vand.u32 %v1356, 4294901760
        %1358 = vmatpush1.msra.mxu0 %v1357
        %1359 = vmatprep.subr.mxu0 0.0
        %1360 = vmatpush1.msra.mxu0 0.0
        %1361 = vmatprep.subr.mxu0 0.0
        %1362 = vmatpush1.msra.mxu0 0.0
        %1363 = vmatprep.subr.mxu0 0.0
        %1364 = vmatpush1.msra.mxu0 0.0
        %1365 = vmatprep.subr.mxu0 0.0
        %1366 = vmatpush1.msra.mxu0 0.0
        %1367 = vmatprep.subr.mxu0 0.0
        %1368 = vmatpush1.msra.mxu0 0.0
        %1369 = vmatprep.subr.mxu0 0.0
        %1370 = vmatpush1.msra.mxu0 0.0
        %1371 = vmatprep.subr.mxu0 0.0
        %1372 = vmatpush1.msra.mxu0 0.0
        %1373 = vmatprep.subr.mxu0 0.0
        %1374 = vmatpush1.msra.mxu0 0.0
        %1375 = vmatprep.subr.mxu0 0.0
        %1376 = vmatpush1.msra.mxu0 0.0
        %1377 = vmatprep.subr.mxu0 0.0
        %1378 = vmatpush1.msra.mxu0 0.0
        %1379 = vmatprep.subr.mxu0 0.0
        %1380 = vmatpush1.msra.mxu0 0.0
        %1381 = vmatprep.subr.mxu0 0.0
        %1382 = vmatpush1.msra.mxu0 0.0
        %1383 = vmatprep.subr.mxu0 0.0
        %1384 = vmatpush1.msra.mxu0 0.0
        %1385 = vmatprep.subr.mxu0 0.0
        %1386 = vmatpush1.msra.mxu0 0.0
        %1387 = vmatprep.subr.mxu0 0.0
        %1388 = vmatpush1.msra.mxu0 0.0
        %1389 = vmatprep.subr.mxu0 0.0
        %1390 = vmatpush1.msra.mxu0 0.0
        %1391 = vmatprep.subr.mxu0 0.0
        %1392 = vmatpush1.msra.mxu0 0.0
        %1393 = vmatprep.subr.mxu0 0.0
        %1394 = vmatpush1.msra.mxu0 0.0
        %1395 = vmatprep.subr.mxu0 0.0
        %1396 = vmatpush1.msra.mxu0 0.0
        %1397 = vmatprep.subr.mxu0 0.0
        %1398 = vmatpush1.msra.mxu0 0.0
        %1399 = vmatprep.subr.mxu0 0.0
        %1400 = vmatpush1.msra.mxu0 0.0
        %1401 = vmatprep.subr.mxu0 0.0
        %1402 = vmatpush1.msra.mxu0 0.0
        %1403 = vmatprep.subr.mxu0 0.0
        %1404 = vmatpush1.msra.mxu0 0.0
        %1405 = vmatprep.subr.mxu0 0.0
        %1406 = vmatpush1.msra.mxu0 0.0
        %1407 = vmatprep.subr.mxu0 0.0
        %1408 = vmatpush1.msra.mxu0 0.0
        %1409 = vmatprep.subr.mxu0 0.0
        %1410 = vmatpush1.msra.mxu0 0.0
        %1411 = vmatprep.subr.mxu0 0.0
        %1412 = vmatpush1.msra.mxu0 0.0
        %1413 = vmatprep.mubr.f32.mxu0 0.0
        %v1414 = vand.u32 %v962, 4294901760
        %1415 = vmatmul.mubr.f32.gmra.mrb[0].mxu0 %v1414
        %v1416 = vpop.f32.mrb[0].mxu0
        %v1417 = vadd.f32 %v1323, %v1416
        %v1418 = vpop.f32.mrb[0].mxu0
        %1419 = vmatprep.mubr.f32.mxu0 0.0
        %v1420 = vand.u32 %v965, 4294901760
        %1421 = vmatmul.mubr.f32.gmra.mrb[0].mxu0 %v1420
        %v1422 = vpop.f32.mrb[0].mxu0
        %v1423 = vadd.f32 %v1331, %v1422
        %v1424 = vpop.f32.mrb[0].mxu0
        %1425 = vdwg.mxu0
        %1426 = vmatprep.subr.mxu0 0.0
        %v1427 = vand.u32 %v955, 4294901760
        %1428 = vmatpush1.msra.mxu0 %v1427
        %1429 = vmatprep.subr.mxu0 0.0
        %v1430 = vand.u32 %v956, 4294901760
        %1431 = vmatpush1.msra.mxu0 %v1430
        %1432 = vmatprep.subr.mxu0 0.0
        %v1433 = vand.u32 %v957, 4294901760
        %1434 = vmatpush1.msra.mxu0 %v1433
        %1435 = vmatprep.subr.mxu0 0.0
        %v1436 = vand.u32 %v958, 4294901760
        %1437 = vmatpush1.msra.mxu0 %v1436
        %1438 = vmatprep.subr.mxu0 0.0
        %v1439 = vand.u32 %v959, 4294901760
        %1440 = vmatpush1.msra.mxu0 %v1439
        %1441 = vmatprep.subr.mxu0 0.0
        %1442 = vmatpush1.msra.mxu0 0.0
        %1443 = vmatprep.subr.mxu0 0.0
        %1444 = vmatpush1.msra.mxu0 0.0
        %1445 = vmatprep.subr.mxu0 0.0
        %1446 = vmatpush1.msra.mxu0 0.0
        %1447 = vmatprep.subr.mxu0 0.0
        %1448 = vmatpush1.msra.mxu0 0.0
        %1449 = vmatprep.subr.mxu0 0.0
        %1450 = vmatpush1.msra.mxu0 0.0
        %1451 = vmatprep.subr.mxu0 0.0
        %1452 = vmatpush1.msra.mxu0 0.0
        %1453 = vmatprep.subr.mxu0 0.0
        %1454 = vmatpush1.msra.mxu0 0.0
        %1455 = vmatprep.subr.mxu0 0.0
        %1456 = vmatpush1.msra.mxu0 0.0
        %1457 = vmatprep.subr.mxu0 0.0
        %1458 = vmatpush1.msra.mxu0 0.0
        %1459 = vmatprep.subr.mxu0 0.0
        %1460 = vmatpush1.msra.mxu0 0.0
        %1461 = vmatprep.subr.mxu0 0.0
        %1462 = vmatpush1.msra.mxu0 0.0
        %1463 = vmatprep.subr.mxu0 0.0
        %1464 = vmatpush1.msra.mxu0 0.0
        %1465 = vmatprep.subr.mxu0 0.0
        %1466 = vmatpush1.msra.mxu0 0.0
        %1467 = vmatprep.subr.mxu0 0.0
        %1468 = vmatpush1.msra.mxu0 0.0
        %1469 = vmatprep.subr.mxu0 0.0
        %1470 = vmatpush1.msra.mxu0 0.0
        %1471 = vmatprep.subr.mxu0 0.0
        %1472 = vmatpush1.msra.mxu0 0.0
        %1473 = vmatprep.subr.mxu0 0.0
        %1474 = vmatpush1.msra.mxu0 0.0
        %1475 = vmatprep.subr.mxu0 0.0
        %1476 = vmatpush1.msra.mxu0 0.0
        %1477 = vmatprep.subr.mxu0 0.0
        %1478 = vmatpush1.msra.mxu0 0.0
        %1479 = vmatprep.subr.mxu0 0.0
        %1480 = vmatpush1.msra.mxu0 0.0
        %1481 = vmatprep.subr.mxu0 0.0
        %1482 = vmatpush1.msra.mxu0 0.0
        %1483 = vmatprep.subr.mxu0 0.0
        %1484 = vmatpush1.msra.mxu0 0.0
        %1485 = vmatprep.subr.mxu0 0.0
        %1486 = vmatpush1.msra.mxu0 0.0
        %1487 = vmatprep.subr.mxu0 0.0
        %1488 = vmatpush1.msra.mxu0 0.0
        %1489 = vmatprep.subr.mxu0 0.0
        %1490 = vmatpush1.msra.mxu0 0.0
        %1491 = vmatprep.subr.mxu0 0.0
        %1492 = vmatpush1.msra.mxu0 0.0
        %1493 = vmatprep.subr.mxu0 0.0
        %1494 = vmatpush1.msra.mxu0 0.0
        %1495 = vmatprep.mubr.f32.mxu0 0.0
        %v1496 = vand.u32 %v962, 4294901760
        %1497 = vmatmul.mubr.f32.gmra.mrb[0].mxu0 %v1496
        %v1498 = vpop.f32.mrb[0].mxu0
        %v1499 = vadd.f32 %v1417, %v1498
        %v1500 = vpop.f32.mrb[0].mxu0
        %1501 = vmatprep.mubr.f32.mxu0 0.0
        %v1502 = vand.u32 %v965, 4294901760
        %1503 = vmatmul.mubr.f32.gmra.mrb[0].mxu0 %v1502
        %v1504 = vpop.f32.mrb[0].mxu0
        %v1505 = vadd.f32 %v1423, %v1504
        %v1506 = vpop.f32.mrb[0].mxu0
        %1507 = vdwg.mxu0
        %v1508 = vmax.f32 %v1499, 1e-05
        %v1509 = vmax.f32 %v1505, 1e-05
        %v1510 = vrsqrt.pop %v1508
        %v1511 = vrsqrt.pop %v1509
        %v1512 = vsel %vm951, 1.0, 0.0
        %v1513 = vsel %vm952, 1.0, 0.0
        %v1514 = vmul.f32 %v1510, %v1512
        %v1515 = vmul.f32 %v1511, %v1513
        %v1516 = vpack.c.bf16 %v1515, %v1514
        %v1517 = vld [vmem:[#allocation2] sm:$0xff]
        %v1518 = vld [vmem:[#allocation2 + $0x8] sm:$0xff]
        %v1519 = vld [vmem:[#allocation12] sm:$0xf]
        %v1520 = vld [vmem:[#allocation12 + $0x4] sm:$0xf]
        %v1521 = vld [vmem:[#allocation12 + $0x8] sm:$0xf]
        %v1522 = vld [vmem:[#allocation12 + $0xc] sm:$0xf]
        %v1523 = vld [vmem:[#allocation12 + $0x10] sm:$0xf]
        %v1524 = vld [vmem:[#allocation12 + $0x14] sm:$0xf]
        %v1525 = vld [vmem:[#allocation12 + $0x18] sm:$0xf]
        %v1526 = vld [vmem:[#allocation12 + $0x1c] sm:$0xf]
        %v1527 = vld [vmem:[#allocation12 + $0x20] sm:$0xf]
        %v1528 = vld [vmem:[#allocation12 + $0x24] sm:$0xf]
        %v1529 = vld [vmem:[#allocation12 + $0x28] sm:$0xf]
        %v1530 = vld [vmem:[#allocation12 + $0x2c] sm:$0xf]
        %v1531 = vld [vmem:[#allocation12 + $0x30] sm:$0xf]
        %v1532 = vld [vmem:[#allocation12 + $0x34] sm:$0xf]
        %v1533 = vld [vmem:[#allocation12 + $0x38] sm:$0xf]
        %v1534 = vld [vmem:[#allocation12 + $0x3c] sm:$0xf]
        %v1551 = vunpack.c.l.b16 %v1519
        %v1552 = vunpack.c.l.b16 %v1520
        %v1553 = vunpack.c.l.b16 %v1521
        %v1554 = vunpack.c.l.b16 %v1522
        %v1555 = vunpack.c.l.b16 %v1523
        %v1556 = vunpack.c.l.b16 %v1524
        %v1557 = vunpack.c.l.b16 %v1525
        %v1558 = vunpack.c.l.b16 %v1526
        %v1559 = vunpack.c.l.b16 %v1527
        %v1560 = vunpack.c.l.b16 %v1528
        %v1561 = vunpack.c.l.b16 %v1529
        %v1562 = vunpack.c.l.b16 %v1530
        %v1563 = vunpack.c.l.b16 %v1531
        %v1564 = vunpack.c.l.b16 %v1532
        %v1565 = vunpack.c.l.b16 %v1533
        %v1566 = vunpack.c.l.b16 %v1534
        %v1567 = vpack.c.b16 %v1552, %v1551
        %v1568 = vpack.c.b16 %v1554, %v1553
        %v1569 = vpack.c.b16 %v1556, %v1555
        %v1570 = vpack.c.b16 %v1558, %v1557
        %v1571 = vpack.c.b16 %v1560, %v1559
        %v1572 = vpack.c.b16 %v1562, %v1561
        %v1573 = vpack.c.b16 %v1564, %v1563
        %v1574 = vpack.c.b16 %v1566, %v1565
        %1583 = vmatprep.subr.bf16.mxu0 0
        %1584 = vmatpush1.bf16.msra.mxu0 %v1567
        %1585 = vmatprep.subr.bf16.mxu0 0
        %1586 = vmatpush1.bf16.msra.mxu0 %v1568
        %1587 = vmatprep.subr.bf16.mxu0 0
        %1588 = vmatpush1.bf16.msra.mxu0 %v1569
        %1589 = vmatprep.subr.bf16.mxu0 0
        %1590 = vmatpush1.bf16.msra.mxu0 %v1570
        %1591 = vmatprep.subr.bf16.mxu0 0
        %1592 = vmatpush1.bf16.msra.mxu0 %v1571
        %1593 = vmatprep.subr.bf16.mxu0 0
        %1594 = vmatpush1.bf16.msra.mxu0 %v1572
        %1595 = vmatprep.subr.bf16.mxu0 0
        %1596 = vmatpush1.bf16.msra.mxu0 %v1573
        %1597 = vmatprep.subr.bf16.mxu0 0
        %1598 = vmatpush1.bf16.msra.mxu0 %v1574
        %1599 = vmatprep.subr.bf16.mxu0 0
        %1600 = vmatpush1.bf16.msra.mxu0 0
        %1601 = vmatprep.subr.bf16.mxu0 0
        %1602 = vmatpush1.bf16.msra.mxu0 0
        %1603 = vmatprep.subr.bf16.mxu0 0
        %1604 = vmatpush1.bf16.msra.mxu0 0
        %1605 = vmatprep.subr.bf16.mxu0 0
        %1606 = vmatpush1.bf16.msra.mxu0 0
        %1607 = vmatprep.subr.bf16.mxu0 0
        %1608 = vmatpush1.bf16.msra.mxu0 0
        %1609 = vmatprep.subr.bf16.mxu0 0
        %1610 = vmatpush1.bf16.msra.mxu0 0
        %1611 = vmatprep.subr.bf16.mxu0 0
        %1612 = vmatpush1.bf16.msra.mxu0 0
        %1613 = vmatprep.subr.bf16.mxu0 0
        %1614 = vmatpush1.bf16.msra.mxu0 0
        %1615 = vmatprep.mubr.bf16.mxu0 0
        %1616 = vmatmul.mubr.bf16.gmra.mrb[0].mxu0 %v1516
        %v1617 = vpop.f32.mrb[0].mxu0
        %v1618 = vadd.f32 0.0, %v1617
        %v1619 = vpop.f32.mrb[0].mxu0
        %v1620 = vpop.f32.mrb[0].mxu0
        %v1621 = vadd.f32 0.0, %v1620
        %v1622 = vpop.f32.mrb[0].mxu0
        %1623 = vdwg.mxu0
        %v1624 = vadd.f32 %v1517, %v1618
        %v1625 = vadd.f32 %v1518, %v1621
        %vm1626 = vcmask 269312
        %1627 = vst.msk [vmem:[#allocation2] sm:$0xff] %vm1626, %v1624
        %1628 = vst.msk [vmem:[#allocation2 + $0x8] sm:$0xff] %vm1626, %v1625
        %v1629 = vld [vmem:[#allocation3] sm:$0xff]
        %v1630 = vld [vmem:[#allocation3 + $0x8] sm:$0xff]
        %1631 = vadd.xlane.f32.xlu0 %v1512
        %v1632 = vpop.xlane.xlu0 %1631
        %1633 = vadd.xlane.f32.xlu0 %v1513
        %v1634 = vpop.xlane.xlu0 %1633
        %v1635 = vadd.f32 %v1629, %v1632
        %v1636 = vadd.f32 %v1630, %v1634
        %vm1637 = vcmask 7168
        %1638 = vst.msk [vmem:[#allocation3] sm:$0xff] %vm1637, %v1635
        %1639 = vst.msk [vmem:[#allocation3 + $0x8] sm:$0xff] %vm1637, %v1636
        // Predicated region
        $region81: #{tpu_custom_call.1} parent=47 // pred_check
          %p1640 = pneg %p442
        $region82: #{tpu_custom_call.1} parent=47 // pred_check_branch
          %1642 = sbr.rel (%p1640) target = $region84
        $region83: #{tpu_custom_call.1} parent=47 // pred_region
          %v1643 = vld [vmem:[#allocation2] sm:$0xff]
          %v1644 = vld [vmem:[#allocation2 + $0x8] sm:$0xff]
          %v1645 = vld [vmem:[%s381] sm:$0xff]
          %v1646 = vld [vmem:[%s381 + $0x8] sm:$0xff]
          %v1647 = vld [vmem:[#allocation3] sm:$0xff]
          %v1648 = vld [vmem:[#allocation3 + $0x8] sm:$0xff]
          %v1649 = vmax.f32 %v1647, 1.0
          %v1650 = vmax.f32 %v1648, 1.0
          %v1651 = vrcp.pop %v1649
          %v1652 = vmul.f32 1.0, %v1651
          %v1653 = vrcp.pop %v1650
          %v1654 = vmul.f32 1.0, %v1653
          %v1655 = vld [vmem:[#allocation13] sm:$0x1]
          %1657 = vset.pattern.permute.xlu0 32
          %1658 = vperm.xlu0 %1657, %v1643
          %v1659 = vpop.permute.xlu0 %1658
          %1662 = vset.pattern.permute.xlu0 32
          %1663 = vperm.xlu0 %1662, %v1644
          %v1664 = vpop.permute.xlu0 %1663
          %v1666 = vmul.f32 %v1645, %v1659
          %v1667 = vmul.f32 %v1646, %v1664
          %v1668 = vsub.f32 %v1643, %v1666
          %v1669 = vsub.f32 %v1644, %v1667
          %1671 = vset.pattern.permute.xlu0 0
          %1672 = vperm.xlu0 %1671, %v1652
          %v1673 = vpop.permute.xlu0 %1672
          %1676 = vset.pattern.permute.xlu0 0
          %1677 = vperm.xlu0 %1676, %v1654
          %v1678 = vpop.permute.xlu0 %1677
          %v1680 = vmul.f32 %v1668, %v1673
          %v1681 = vmul.f32 %v1669, %v1678
          %v1683 = vlaneseq
          %v1684 = vshrl.u32 %v1683, 7
          %v1685 = vsub.s32 0, %v1684
          %v1686 = vrot.slane %v1655, %v1685
          %v1688 = vmul.f32 %v1686, %v1680
          %v1689 = vmul.f32 %v1686, %v1681
          %v1690 = vld [vmem:[#allocation15] sm:$0x1]
          %v1692 = vlaneseq
          %v1693 = vshrl.u32 %v1692, 7
          %v1694 = vsub.s32 0, %v1693
          %v1695 = vrot.slane %v1690, %v1694
          %v1697 = vadd.f32 %v1688, %v1695
          %v1698 = vadd.f32 %v1689, %v1695
          %v1699 = vmax.f32 %v1697, 0.0
          %v1700 = vmax.f32 %v1698, 0.0
          %vm1701 = vcmask 261120
          %1702 = vst.msk [vmem:[%s436] sm:$0xff] %vm1701, %v1699
          %1703 = vst.msk [vmem:[%s436 + $0x8] sm:$0xff] %vm1701, %v1700
        $region84: #{tpu_custom_call.1} parent=47 // pred_fallthru
          _
        %s1704 = sand.u32 %s221, 1
        %s1705 = scalar_lea.sflag [#allocation6], %s1704
        %s1706 = sand.u32 %s221, 1
        %s1707 = smul.addr %s1706, 16
        %s1708 = scalar_lea.vmem [#allocation16], %s1707
        // Predicated region
        $region85: #{tpu_custom_call.1} parent=47 // pred_check
          %p1709 = pneg %p231
        $region86: #{tpu_custom_call.1} parent=47 // pred_check_branch
          %1711 = sbr.rel (%p1709) target = $region88
        $region87: #{tpu_custom_call.1} parent=47 // pred_region
          %s1712 = smul.u32 2, %s33
          %s1714 = ssub.s32 256, 256
          %1715 = vsyncadd %s1705, %s1714
          %s1716 = smul.addr %s1712, 128
          %s1717 = scalar_lea.hbm %s7, %s1716
          %s1718 = sshll.u32 %s1708, 4
          %s1719 = int_to_ptr.vmem [resolvable:$true] %s1718
          %1724 = dma.vmem_to_hbm [thread:$0]  %s1719, 256, %s1717, %s1705, 128, 128, 8
        $region88: #{tpu_custom_call.1} parent=47 // pred_fallthru
          _
      $region48: #{tpu_custom_call.1} parent=5 // pred_fallthru
        _
      %p1725 = scmp.le.s32.totalorder 2, %s24
      // Predicated region
      $region89: #{tpu_custom_call.1} parent=5 // pred_check
        %p1726 = pneg %p1725
      $region90: #{tpu_custom_call.1} parent=5 // pred_check_branch
        %1728 = sbr.rel (%p1726) target = $region92
      $region91: #{tpu_custom_call.1} parent=5 // pred_region
        %s1729 = ssub.s32 %s24, 2
        // Predicated region
        $region93: #{tpu_custom_call.1} parent=91 // pred_check
          %p1730 = pneg %p237
        $region94: #{tpu_custom_call.1} parent=91 // pred_check_branch
          %1732 = sbr.rel (%p1730) target = $region96
        $region95: #{tpu_custom_call.1} parent=91 // pred_region
          %s1733 = sand.u32 %s222, 1
          %s1734 = scalar_lea.sflag [#allocation6], %s1733
          %s1735 = sand.u32 %s222, 1
          %s1736 = smul.addr %s1735, 16
          %s1737 = scalar_lea.vmem [#allocation16], %s1736
          %1738 = dma.done %s1734, 256
        $region96: #{tpu_custom_call.1} parent=91 // pred_fallthru
          _
      $region92: #{tpu_custom_call.1} parent=5 // pred_fallthru
        _
    $region6: #{tpu_custom_call.1} parent=1 // loop_footer
      %s28 = sadd.s32 1, %s24
    $region7: #{tpu_custom_call.1} parent=1 // loop_footer_branch
      %23 = sbr.rel target = $region3
    $region8: #{tpu_custom_call.1} parent=1 // loop_exit
      _
    %1739 = vsyncpa [#allocation5], 1
    %s1740 = scalar_lea.sflag [#allocation5], 1
    %1741 = vsyncpa %s1740, 1
    %1742 = vsyncpa [#allocation8], 1
    %s1743 = scalar_lea.sflag [#allocation8], 1
    %1744 = vsyncpa %s1743, 1
    %1745 = vsyncpa [#allocation11], 1
    %1746 = vsyncpa [#allocation14], 1
    %1747 = vsyncpa [#allocation6], 1
    %s1748 = scalar_lea.sflag [#allocation6], 1
    %1749 = vsyncpa %s1748, 1

// kernel: tpu_custom_call.1
$region0: #{tpu_custom_call.1}
  #allocation0 [shape = 'u32[]', space=smem, size = 0x4, offset = 0x4, fixed_abs, tag = 'smem constant byte address 0x4 - core index']
  #allocation1 [shape = 'u32[144,128]{1,0:T(1,128)}', space=vmem, size = 0x12000, scoped, tag = 'internal scratch']
  #allocation2 [shape = 'f32[16,33]{1,0:T(8,128)}', space=vmem, size = 0x2000, scoped, tag = 'scratch operand']
  #allocation3 [shape = 'f32[16,1]{1,0:T(8,128)}', space=vmem, size = 0x2000, scoped, tag = 'scratch operand']
  %s0 = inlined_call_operand.hbm [shape: f32[32,8], index: 0, kind: input, shape index: {}]
  %s1 = inlined_call_operand.hbm [shape: f32[32,40], index: 1, kind: input, shape index: {}]
  %s2 = inlined_call_operand.hbm [shape: f32[8,128], index: 2, kind: input, shape index: {}]
  %s3 = inlined_call_operand.hbm [shape: f32[40,128], index: 3, kind: input, shape index: {}]
  %s4 = inlined_call_operand.hbm [shape: bf16[128,33], index: 4, kind: input, shape index: {}]
  %s5 = inlined_call_operand.hbm [shape: f32[1,32], index: 5, kind: input, shape index: {}]
  %s6 = inlined_call_operand.hbm [shape: f32[1,32], index: 6, kind: input, shape index: {}]
  %s7 = inlined_call_operand.hbm [shape: f32[32,32], index: 7, kind: output, shape index: {}]
  %s8 = sld [smem:[#allocation0]]
  $region97: #{tpu_custom_call.1} parent=0
    _
  %s10 = ssub.s32 1, %s8
  %s11 = scalar_select 0, %s10, %s8
  $region1: #{tpu_custom_call.1} parent=0
    #allocation4 [shape = 'u8[16384]{0}', space=vmem, size = 0x4000, scoped, tag = 'input window, operand 0']
    #allocation5 [shape = 's32[2]{0}', space=sflag, size = 0x8, scoped, tag = 'scoped memory for tpu_custom_call.1']
    #allocation6 [shape = 's32[2]{0}', space=sflag, size = 0x8, scoped, tag = 'scoped memory for tpu_custom_call.1']
    #allocation7 [shape = 'u8[16384]{0}', space=vmem, size = 0x4000, scoped, tag = 'input window, operand 1']
    #allocation8 [shape = 's32[2]{0}', space=sflag, size = 0x8, scoped, tag = 'scoped memory for tpu_custom_call.1']
    #allocation9 [shape = 'u8[4096]{0}', space=vmem, size = 0x1000, scoped, tag = 'input window, operand 2, single buffered']
    #allocation10 [shape = 'u8[20480]{0}', space=vmem, size = 0x5000, scoped, tag = 'input window, operand 3, single buffered']
    #allocation11 [shape = 's32[1]{0}', space=sflag, size = 0x4, scoped, tag = 'scoped memory for tpu_custom_call.1']
    #allocation12 [shape = 'u8[32768]{0}', space=vmem, size = 0x8000, scoped, tag = 'input window, operand 4, single buffered']
    #allocation13 [shape = 'u8[512]{0}', space=vmem, size = 0x400, scoped, tag = 'input window, operand 5, single buffered']
    #allocation14 [shape = 's32[1]{0}', space=sflag, size = 0x4, scoped, tag = 'scoped memory for tpu_custom_call.1']
    #allocation15 [shape = 'u8[512]{0}', space=vmem, size = 0x400, scoped, tag = 'input window, operand 6, single buffered']
    #allocation16 [shape = 'u8[16384]{0}', space=vmem, size = 0x4000, scoped, tag = 'output window, operand 0']
    %12 = vsyncpa [#allocation5], 0
    %s13 = scalar_lea.sflag [#allocation5], 1
    %14 = vsyncpa %s13, 0
    %15 = vsyncpa [#allocation8], 0
    %s16 = scalar_lea.sflag [#allocation8], 1
    %17 = vsyncpa %s16, 0
    %18 = vsyncpa [#allocation11], 0
    %19 = vsyncpa [#allocation14], 0
    %20 = vsyncpa [#allocation6], 0
    %s21 = scalar_lea.sflag [#allocation6], 1
    %22 = vsyncpa %s21, 0
    loop: start=0, step=1, limit=4
    $region2: #{tpu_custom_call.1} parent=1 // loop_pre_header
      _
    $region3: #{tpu_custom_call.1} parent=1 // loop_header
      %s24 = sphi 0, %s28
      %p25 = scmp.ge.s32.totalorder %s24, 4
      %s31 = sphi 0, %s43
      %s32 = sphi 0, %s39
      %s33 = sphi 0, %s31
      %s34 = sphi 0, %s32
      %s35 = sphi 0, %s33
      %s36 = sphi 0, %s34
      %s46 = sphi 0, %s48
      %s49 = sphi 0, %s46
      %s50 = sphi 0, %s49
      %s66 = sphi 0, %s50
      %s72 = sphi 0, %s74
      %s75 = sphi 0, %s72
      %s76 = sphi 0, %s75
      %s92 = sphi 0, %s76
      %s98 = sphi 0, %s100
      %s101 = sphi 0, %s98
      %s102 = sphi 0, %s101
      %s118 = sphi 0, %s102
      %s124 = sphi 0, %s126
      %s127 = sphi 0, %s124
      %s128 = sphi 0, %s127
      %s144 = sphi 0, %s128
      %s150 = sphi 0, %s152
      %s153 = sphi 0, %s150
      %s154 = sphi 0, %s153
      %s170 = sphi 0, %s154
      %s174 = sphi 0, %s174
      %s176 = sphi 0, %s174
      %s177 = sphi 0, %s176
      %s191 = sphi 0, %s177
      %s195 = sphi 0, %s195
      %s197 = sphi 0, %s195
      %s198 = sphi 0, %s197
      %s212 = sphi 0, %s198
      %s218 = sphi 0, %s220
      %s221 = sphi 0, %s218
      %s222 = sphi 0, %s221
      %s238 = sphi 0, %s222
    $region4: #{tpu_custom_call.1} parent=1 // loop_header_branch
      %27 = sbr.rel (%p25) target = $region8
    $region5: #{tpu_custom_call.1} parent=1 // loop_body
      %s29 = ssub.s32 %s24, 1
      %s30 = ssub.s32 %s24, 2
      %s37 = sadd.s32 1, %s32
      %p38 = scmp.ge.s32.totalorder %s37, 1
      %s39 = scalar_select %p38, 0, %s37
      %s40 = sadd.s32 1, %s31
      %s41 = scalar_select %p38, %s40, %s31
      %p42 = scmp.ge.s32.totalorder %s41, 2
      %s43 = scalar_select %p42, 0, %s41
      %s44 = ssub.s32 %s31, %s43
      %p45 = scmp.eq.s32.totalorder %s44, 0
      %s47 = sadd.s32 %s46, 1
      %s48 = scalar_select %p45, %s46, %s47
      %p51 = pneg %p45
      %p52 = scmp.eq.s32.totalorder %s24, 1
      %p53 = por %p51, %p52
      %p54 = scmp.ne.s32.totalorder %s46, %s49
      %p55 = scmp.eq.s32.totalorder %s24, 0
      %p56 = por %p54, %p55
      %p57 = scmp.ne.s32.totalorder %s46, %s49
      %p58 = scmp.eq.s32.totalorder %s29, 1
      %p59 = por %p57, %p58
      %p60 = scmp.ne.s32.totalorder %s49, %s50
      %p61 = scmp.eq.s32.totalorder %s29, 0
      %p62 = por %p60, %p61
      %p63 = scmp.ne.s32.totalorder %s49, %s50
      %p64 = scmp.eq.s32.totalorder %s30, 1
      %p65 = por %p63, %p64
      %p67 = scmp.ne.s32.totalorder %s50, %s66
      %p68 = scmp.eq.s32.totalorder %s30, 0
      %p69 = por %p67, %p68
      %s70 = ssub.s32 %s31, %s43
      %p71 = scmp.eq.s32.totalorder %s70, 0
      %s73 = sadd.s32 %s72, 1
      %s74 = scalar_select %p71, %s72, %s73
      %p77 = pneg %p71
      %p78 = scmp.eq.s32.totalorder %s24, 1
      %p79 = por %p77, %p78
      %p80 = scmp.ne.s32.totalorder %s72, %s75
      %p81 = scmp.eq.s32.totalorder %s24, 0
      %p82 = por %p80, %p81
      %p83 = scmp.ne.s32.totalorder %s72, %s75
      %p84 = scmp.eq.s32.totalorder %s29, 1
      %p85 = por %p83, %p84
      %p86 = scmp.ne.s32.totalorder %s75, %s76
      %p87 = scmp.eq.s32.totalorder %s29, 0
      %p88 = por %p86, %p87
      %p89 = scmp.ne.s32.totalorder %s75, %s76
      %p90 = scmp.eq.s32.totalorder %s30, 1
      %p91 = por %p89, %p90
      %p93 = scmp.ne.s32.totalorder %s76, %s92
      %p94 = scmp.eq.s32.totalorder %s30, 0
      %p95 = por %p93, %p94
      %s96 = ssub.s32 %s32, %s39
      %p97 = scmp.eq.s32.totalorder %s96, 0
      %s99 = sadd.s32 %s98, 1
      %s100 = scalar_select %p97, %s98, %s99
      %p103 = pneg %p97
      %p104 = scmp.eq.s32.totalorder %s24, 1
      %p105 = por %p103, %p104
      %p106 = scmp.ne.s32.totalorder %s98, %s101
      %p107 = scmp.eq.s32.totalorder %s24, 0
      %p108 = por %p106, %p107
      %p109 = scmp.ne.s32.totalorder %s98, %s101
      %p110 = scmp.eq.s32.totalorder %s29, 1
      %p111 = por %p109, %p110
      %p112 = scmp.ne.s32.totalorder %s101, %s102
      %p113 = scmp.eq.s32.totalorder %s29, 0
      %p114 = por %p112, %p113
      %p115 = scmp.ne.s32.totalorder %s101, %s102
      %p116 = scmp.eq.s32.totalorder %s30, 1
      %p117 = por %p115, %p116
      %p119 = scmp.ne.s32.totalorder %s102, %s118
      %p120 = scmp.eq.s32.totalorder %s30, 0
      %p121 = por %p119, %p120
      %s122 = ssub.s32 %s32, %s39
      %p123 = scmp.eq.s32.totalorder %s122, 0
      %s125 = sadd.s32 %s124, 1
      %s126 = scalar_select %p123, %s124, %s125
      %p129 = pneg %p123
      %p130 = scmp.eq.s32.totalorder %s24, 1
      %p131 = por %p129, %p130
      %p132 = scmp.ne.s32.totalorder %s124, %s127
      %p133 = scmp.eq.s32.totalorder %s24, 0
      %p134 = por %p132, %p133
      %p135 = scmp.ne.s32.totalorder %s124, %s127
      %p136 = scmp.eq.s32.totalorder %s29, 1
      %p137 = por %p135, %p136
      %p138 = scmp.ne.s32.totalorder %s127, %s128
      %p139 = scmp.eq.s32.totalorder %s29, 0
      %p140 = por %p138, %p139
      %p141 = scmp.ne.s32.totalorder %s127, %s128
      %p142 = scmp.eq.s32.totalorder %s30, 1
      %p143 = por %p141, %p142
      %p145 = scmp.ne.s32.totalorder %s128, %s144
      %p146 = scmp.eq.s32.totalorder %s30, 0
      %p147 = por %p145, %p146
      %s148 = ssub.s32 %s32, %s39
      %p149 = scmp.eq.s32.totalorder %s148, 0
      %s151 = sadd.s32 %s150, 1
      %s152 = scalar_select %p149, %s150, %s151
      %p155 = pneg %p149
      %p156 = scmp.eq.s32.totalorder %s24, 1
      %p157 = por %p155, %p156
      %p158 = scmp.ne.s32.totalorder %s150, %s153
      %p159 = scmp.eq.s32.totalorder %s24, 0
      %p160 = por %p158, %p159
      %p161 = scmp.ne.s32.totalorder %s150, %s153
      %p162 = scmp.eq.s32.totalorder %s29, 1
      %p163 = por %p161, %p162
      %p164 = scmp.ne.s32.totalorder %s153, %s154
      %p165 = scmp.eq.s32.totalorder %s29, 0
      %p166 = por %p164, %p165
      %p167 = scmp.ne.s32.totalorder %s153, %s154
      %p168 = scmp.eq.s32.totalorder %s30, 1
      %p169 = por %p167, %p168
      %p171 = scmp.ne.s32.totalorder %s154, %s170
      %p172 = scmp.eq.s32.totalorder %s30, 0
      %p173 = por %p171, %p172
      %s175 = sadd.s32 %s174, 1
      %p178 = scmp.eq.s32.totalorder %s24, 1
      %p179 = scmp.ne.s32.totalorder %s174, %s176
      %p180 = scmp.eq.s32.totalorder %s24, 0
      %p181 = por %p179, %p180
      %p182 = scmp.ne.s32.totalorder %s174, %s176
      %p183 = scmp.eq.s32.totalorder %s29, 1
      %p184 = por %p182, %p183
      %p185 = scmp.ne.s32.totalorder %s176, %s177
      %p186 = scmp.eq.s32.totalorder %s29, 0
      %p187 = por %p185, %p186
      %p188 = scmp.ne.s32.totalorder %s176, %s177
      %p189 = scmp.eq.s32.totalorder %s30, 1
      %p190 = por %p188, %p189
      %p192 = scmp.ne.s32.totalorder %s177, %s191
      %p193 = scmp.eq.s32.totalorder %s30, 0
      %p194 = por %p192, %p193
      %s196 = sadd.s32 %s195, 1
      %p199 = scmp.eq.s32.totalorder %s24, 1
      %p200 = scmp.ne.s32.totalorder %s195, %s197
      %p201 = scmp.eq.s32.totalorder %s24, 0
      %p202 = por %p200, %p201
      %p203 = scmp.ne.s32.totalorder %s195, %s197
      %p204 = scmp.eq.s32.totalorder %s29, 1
      %p205 = por %p203, %p204
      %p206 = scmp.ne.s32.totalorder %s197, %s198
      %p207 = scmp.eq.s32.totalorder %s29, 0
      %p208 = por %p206, %p207
      %p209 = scmp.ne.s32.totalorder %s197, %s198
      %p210 = scmp.eq.s32.totalorder %s30, 1
      %p211 = por %p209, %p210
      %p213 = scmp.ne.s32.totalorder %s198, %s212
      %p214 = scmp.eq.s32.totalorder %s30, 0
      %p215 = por %p213, %p214
      %s216 = ssub.s32 %s31, %s43
      %p217 = scmp.eq.s32.totalorder %s216, 0
      %s219 = sadd.s32 %s218, 1
      %s220 = scalar_select %p217, %s218, %s219
      %p223 = pneg %p217
      %p224 = scmp.eq.s32.totalorder %s24, 1
      %p225 = por %p223, %p224
      %p226 = scmp.ne.s32.totalorder %s218, %s221
      %p227 = scmp.eq.s32.totalorder %s24, 0
      %p228 = por %p226, %p227
      %p229 = scmp.ne.s32.totalorder %s218, %s221
      %p230 = scmp.eq.s32.totalorder %s29, 1
      %p231 = por %p229, %p230
      %p232 = scmp.ne.s32.totalorder %s221, %s222
      %p233 = scmp.eq.s32.totalorder %s29, 0
      %p234 = por %p232, %p233
      %p235 = scmp.ne.s32.totalorder %s221, %s222
      %p236 = scmp.eq.s32.totalorder %s30, 1
      %p237 = por %p235, %p236
      %p239 = scmp.ne.s32.totalorder %s222, %s238
      %p240 = scmp.eq.s32.totalorder %s30, 0
      %p241 = por %p239, %p240
      %p242 = scmp.le.s32.totalorder 1, %s24
      %p243 = scmp.lt.s32.totalorder %s24, 3
      %p244 = pnand %p242, %p243
      %p245 = pneg %p244
      // Predicated region
      $region9: #{tpu_custom_call.1} parent=5 // pred_check
        _
      $region10: #{tpu_custom_call.1} parent=5 // pred_check_branch
        %247 = sbr.rel (%p244) target = $region12
      $region11: #{tpu_custom_call.1} parent=5 // pred_region
        %s248 = ssub.s32 %s24, 1
        // Predicated region
        $region13: #{tpu_custom_call.1} parent=11 // pred_check
          %p249 = pneg %p114
        $region14: #{tpu_custom_call.1} parent=11 // pred_check_branch
          %251 = sbr.rel (%p249) target = $region16
        $region15: #{tpu_custom_call.1} parent=11 // pred_region
          %s253 = ssub.s32 128, 128
          %254 = vsyncadd [#allocation8], %s253
          %s255 = smul.addr %s34, 128
          %s256 = scalar_lea.hbm %s2, %s255
          %s258 = sshll.u32 [#allocation9], 4
          %s259 = int_to_ptr.vmem [resolvable:$true] %s258
          %261 = dma.hbm_to_vmem [thread:$0]  %s256, 128, %s259, [#allocation8]
        $region16: #{tpu_custom_call.1} parent=11 // pred_fallthru
          _
        // Predicated region
        $region17: #{tpu_custom_call.1} parent=11 // pred_check
          %p262 = pneg %p140
        $region18: #{tpu_custom_call.1} parent=11 // pred_check_branch
          %264 = sbr.rel (%p262) target = $region20
        $region19: #{tpu_custom_call.1} parent=11 // pred_region
          %s266 = ssub.s32 640, 640
          %267 = vsyncadd [#allocation11], %s266
          %s268 = smul.addr %s34, 128
          %s269 = scalar_lea.hbm %s3, %s268
          %s270 = sshll.u32 [#allocation10], 4
          %s271 = int_to_ptr.vmem [resolvable:$true] %s270
          %276 = dma.hbm_to_vmem [thread:$0]  %s269, 640, %s271, [#allocation11], 128, 128, 8
        $region20: #{tpu_custom_call.1} parent=11 // pred_fallthru
          _
        // Predicated region
        $region21: #{tpu_custom_call.1} parent=11 // pred_check
          %p277 = pneg %p166
        $region22: #{tpu_custom_call.1} parent=11 // pred_check_branch
          %279 = sbr.rel (%p277) target = $region24
        $region23: #{tpu_custom_call.1} parent=11 // pred_region
          %s280 = smul.u32 16, %s34
          %s282 = ssub.s32 1024, 1024
          %283 = vsyncadd [#allocation11], %s282
          %s284 = smul.addr %s280, 64
          %s285 = scalar_lea.hbm %s4, %s284
          %s286 = sshll.u32 [#allocation12], 4
          %s287 = int_to_ptr.vmem [resolvable:$true] %s286
          %292 = dma.hbm_to_vmem [thread:$0]  %s285, 1024, %s287, [#allocation11], 64, 64, 4
        $region24: #{tpu_custom_call.1} parent=11 // pred_fallthru
          _
        // Predicated region
        $region25: #{tpu_custom_call.1} parent=11 // pred_check
          %p293 = pneg %p187
        $region26: #{tpu_custom_call.1} parent=11 // pred_check_branch
          %295 = sbr.rel (%p293) target = $region28
        $region27: #{tpu_custom_call.1} parent=11 // pred_region
          %s297 = ssub.s32 16, 16
          %298 = vsyncadd [#allocation14], %s297
          %s300 = sshll.u32 [#allocation13], 4
          %s301 = int_to_ptr.vmem [resolvable:$true] %s300
          %303 = dma.hbm_to_vmem [thread:$0]  %s5, 16, %s301, [#allocation14]
        $region28: #{tpu_custom_call.1} parent=11 // pred_fallthru
          _
        // Predicated region
        $region29: #{tpu_custom_call.1} parent=11 // pred_check
          %p304 = pneg %p208
        $region30: #{tpu_custom_call.1} parent=11 // pred_check_branch
          %306 = sbr.rel (%p304) target = $region32
        $region31: #{tpu_custom_call.1} parent=11 // pred_region
          %s308 = ssub.s32 16, 16
          %309 = vsyncadd [#allocation14], %s308
          %s311 = sshll.u32 [#allocation15], 4
          %s312 = int_to_ptr.vmem [resolvable:$true] %s311
          %314 = dma.hbm_to_vmem [thread:$0]  %s6, 16, %s312, [#allocation14]
        $region32: #{tpu_custom_call.1} parent=11 // pred_fallthru
          _
      $region12: #{tpu_custom_call.1} parent=5 // pred_fallthru
        _
      %p315 = scmp.lt.s32.totalorder %s24, 2
      // Predicated region
      $region33: #{tpu_custom_call.1} parent=5 // pred_check
        %p316 = pneg %p315
      $region34: #{tpu_custom_call.1} parent=5 // pred_check_branch
        %318 = sbr.rel (%p316) target = $region36
      $region35: #{tpu_custom_call.1} parent=5 // pred_region
        // Predicated region
        $region37: #{tpu_custom_call.1} parent=35 // pred_check
          %p319 = pneg %p56
        $region38: #{tpu_custom_call.1} parent=35 // pred_check_branch
          %321 = sbr.rel (%p319) target = $region40
        $region39: #{tpu_custom_call.1} parent=35 // pred_region
          %s322 = sand.u32 %s46, 1
          %s323 = scalar_lea.sflag [#allocation5], %s322
          %s324 = sand.u32 %s46, 1
          %s325 = smul.addr %s324, 16
          %s326 = scalar_lea.vmem [#allocation4], %s325
          %s327 = smul.u32 2, %s31
          %s329 = ssub.s32 256, 256
          %330 = vsyncadd %s323, %s329
          %s331 = smul.addr %s327, 128
          %s332 = scalar_lea.hbm %s0, %s331
          %s333 = sshll.u32 %s326, 4
          %s334 = int_to_ptr.vmem [resolvable:$true] %s333
          %339 = dma.hbm_to_vmem [thread:$0]  %s332, 256, %s334, %s323, 128, 128, 8
        $region40: #{tpu_custom_call.1} parent=35 // pred_fallthru
          _
        // Predicated region
        $region41: #{tpu_custom_call.1} parent=35 // pred_check
          %p340 = pneg %p82
        $region42: #{tpu_custom_call.1} parent=35 // pred_check_branch
          %342 = sbr.rel (%p340) target = $region44
        $region43: #{tpu_custom_call.1} parent=35 // pred_region
          %s343 = sand.u32 %s24, 1
          %s344 = scalar_lea.sflag [#allocation8], %s343
          %s345 = sand.u32 %s72, 1
          %s346 = smul.addr %s345, 16
          %s347 = scalar_lea.vmem [#allocation7], %s346
          %s348 = smul.u32 2, %s31
          %s350 = ssub.s32 256, 256
          %351 = vsyncadd %s344, %s350
          %s352 = smul.addr %s348, 128
          %s353 = scalar_lea.hbm %s1, %s352
          %s354 = sshll.u32 %s347, 4
          %s355 = int_to_ptr.vmem [resolvable:$true] %s354
          %360 = dma.hbm_to_vmem [thread:$0]  %s353, 256, %s355, %s344, 128, 128, 8
        $region44: #{tpu_custom_call.1} parent=35 // pred_fallthru
          _
      $region36: #{tpu_custom_call.1} parent=5 // pred_fallthru
        _
      %p361 = scmp.le.s32.totalorder 1, %s24
      %p362 = scmp.lt.s32.totalorder %s24, 3
      %p363 = pnand %p361, %p362
      %p364 = pneg %p363
      // Predicated region
      $region45: #{tpu_custom_call.1} parent=5 // pred_check
        _
      $region46: #{tpu_custom_call.1} parent=5 // pred_check_branch
        %366 = sbr.rel (%p363) target = $region48
      $region47: #{tpu_custom_call.1} parent=5 // pred_region
        %s367 = ssub.s32 %s24, 1
        %s368 = sand.u32 %s49, 1
        %s369 = scalar_lea.sflag [#allocation5], %s368
        %s370 = sand.u32 %s49, 1
        %s371 = smul.addr %s370, 16
        %s372 = scalar_lea.vmem [#allocation4], %s371
        // Predicated region
        $region49: #{tpu_custom_call.1} parent=47 // pred_check
          %p373 = pneg %p62
        $region50: #{tpu_custom_call.1} parent=47 // pred_check_branch
          %375 = sbr.rel (%p373) target = $region52
        $region51: #{tpu_custom_call.1} parent=47 // pred_region
          %376 = dma.done %s369, 256
        $region52: #{tpu_custom_call.1} parent=47 // pred_fallthru
          _
        %s377 = sand.u32 %s29, 1
        %s378 = scalar_lea.sflag [#allocation8], %s377
        %s379 = sand.u32 %s75, 1
        %s380 = smul.addr %s379, 16
        %s381 = scalar_lea.vmem [#allocation7], %s380
        // Predicated region
        $region53: #{tpu_custom_call.1} parent=47 // pred_check
          %p382 = pneg %p88
        $region54: #{tpu_custom_call.1} parent=47 // pred_check_branch
          %384 = sbr.rel (%p382) target = $region56
        $region55: #{tpu_custom_call.1} parent=47 // pred_region
          %385 = dma.done %s378, 256
        $region56: #{tpu_custom_call.1} parent=47 // pred_fallthru
          _
        // Predicated region
        $region57: #{tpu_custom_call.1} parent=47 // pred_check
          %p386 = pneg %p114
        $region58: #{tpu_custom_call.1} parent=47 // pred_check_branch
          %388 = sbr.rel (%p386) target = $region60
        $region59: #{tpu_custom_call.1} parent=47 // pred_region
          %389 = dma.done [#allocation8], 128
        $region60: #{tpu_custom_call.1} parent=47 // pred_fallthru
          _
        // Predicated region
        $region61: #{tpu_custom_call.1} parent=47 // pred_check
          %p390 = pneg %p140
        $region62: #{tpu_custom_call.1} parent=47 // pred_check_branch
          %392 = sbr.rel (%p390) target = $region64
        $region63: #{tpu_custom_call.1} parent=47 // pred_region
          %393 = dma.done [#allocation11], 640
        $region64: #{tpu_custom_call.1} parent=47 // pred_fallthru
          _
        // Predicated region
        $region65: #{tpu_custom_call.1} parent=47 // pred_check
          %p394 = pneg %p166
        $region66: #{tpu_custom_call.1} parent=47 // pred_check_branch
          %396 = sbr.rel (%p394) target = $region68
        $region67: #{tpu_custom_call.1} parent=47 // pred_region
          %397 = dma.done [#allocation11], 1024
        $region68: #{tpu_custom_call.1} parent=47 // pred_fallthru
          _
        // Predicated region
        $region69: #{tpu_custom_call.1} parent=47 // pred_check
          %p398 = pneg %p187
        $region70: #{tpu_custom_call.1} parent=47 // pred_check_branch
          %400 = sbr.rel (%p398) target = $region72
        $region71: #{tpu_custom_call.1} parent=47 // pred_region
          %401 = dma.done [#allocation14], 16
        $region72: #{tpu_custom_call.1} parent=47 // pred_fallthru
          _
        // Predicated region
        $region73: #{tpu_custom_call.1} parent=47 // pred_check
          %p402 = pneg %p208
        $region74: #{tpu_custom_call.1} parent=47 // pred_check_branch
          %404 = sbr.rel (%p402) target = $region76
        $region75: #{tpu_custom_call.1} parent=47 // pred_region
          %405 = dma.done [#allocation14], 16
        $region76: #{tpu_custom_call.1} parent=47 // pred_fallthru
          _
        %s406 = sand.u32 %s49, 1
        %s407 = scalar_lea.sflag [#allocation5], %s406
        %s408 = sand.u32 %s49, 1
        %s409 = smul.addr %s408, 16
        %s410 = scalar_lea.vmem [#allocation4], %s409
        %p411 = pneg %p62
        %p412 = pneg %p59
        %s413 = sand.u32 %s29, 1
        %s414 = scalar_lea.sflag [#allocation8], %s413
        %s415 = sand.u32 %s75, 1
        %s416 = smul.addr %s415, 16
        %s417 = scalar_lea.vmem [#allocation7], %s416
        %p418 = pneg %p88
        %p419 = pneg %p85
        %p420 = pneg %p114
        %p421 = pneg %p111
        %p422 = pneg %p140
        %p423 = pneg %p137
        %p424 = pneg %p166
        %p425 = pneg %p163
        %p426 = pneg %p187
        %p427 = pneg %p184
        %p428 = pneg %p208
        %p429 = pneg %p205
        %p430 = pneg %p234
        %p431 = pneg %p231
        %s432 = sand.u32 %s221, 1
        %s433 = scalar_lea.sflag [#allocation6], %s432
        %s434 = sand.u32 %s221, 1
        %s435 = smul.addr %s434, 16
        %s436 = scalar_lea.vmem [#allocation16], %s435
        %s437 = smul.u32 2, %s33
        %s438 = smul.u32 2, %s33
        %s439 = smul.u32 16, %s34
        %s440 = smul.u32 2, %s33
        %p442 = scmp.eq.s32.totalorder %s34, 0
        // Predicated region
        $region77: #{tpu_custom_call.1} parent=47 // pred_check
          %p443 = pneg %p442
        $region78: #{tpu_custom_call.1} parent=47 // pred_check_branch
          %445 = sbr.rel (%p443) target = $region80
        $region79: #{tpu_custom_call.1} parent=47 // pred_region
          %vm446 = vcmask 269312
          %447 = vst.msk [vmem:[#allocation2] sm:$0xff] %vm446, 0.0
          %448 = vst.msk [vmem:[#allocation2 + $0x8] sm:$0xff] %vm446, 0.0
          %vm449 = vcmask 7168
          %450 = vst.msk [vmem:[#allocation3] sm:$0xff] %vm449, 0.0
          %451 = vst.msk [vmem:[#allocation3 + $0x8] sm:$0xff] %vm449, 0.0
        $region80: #{tpu_custom_call.1} parent=47 // pred_fallthru
          _
        %v452 = vld [vmem:[%s372] sm:$0xff]
        %v453 = vld [vmem:[%s372 + $0x8] sm:$0xff]
        %v454 = vld [vmem:[#allocation9] sm:$0xff]
        %vm455 = vcmask 64512
        %v457 = vsel %vm455, %v452, 0
        %v460 = vsel %vm455, %v453, 0
        %462 = vmatprep.subr.mxu0 0.0
        %463 = vmatpush1.msra.mxu0 %v454
        %464 = vmatprep.subr.mxu0 0.0
        %465 = vmatpush1.msra.mxu0 0.0
        %466 = vmatprep.subr.mxu0 0.0
        %467 = vmatpush1.msra.mxu0 0.0
        %468 = vmatprep.subr.mxu0 0.0
        %469 = vmatpush1.msra.mxu0 0.0
        %470 = vmatprep.subr.mxu0 0.0
        %471 = vmatpush1.msra.mxu0 0.0
        %472 = vmatprep.subr.mxu0 0.0
        %473 = vmatpush1.msra.mxu0 0.0
        %474 = vmatprep.subr.mxu0 0.0
        %475 = vmatpush1.msra.mxu0 0.0
        %476 = vmatprep.subr.mxu0 0.0
        %477 = vmatpush1.msra.mxu0 0.0
        %478 = vmatprep.subr.mxu0 0.0
        %479 = vmatpush1.msra.mxu0 0.0
        %480 = vmatprep.subr.mxu0 0.0
        %481 = vmatpush1.msra.mxu0 0.0
        %482 = vmatprep.subr.mxu0 0.0
        %483 = vmatpush1.msra.mxu0 0.0
        %484 = vmatprep.subr.mxu0 0.0
        %485 = vmatpush1.msra.mxu0 0.0
        %486 = vmatprep.subr.mxu0 0.0
        %487 = vmatpush1.msra.mxu0 0.0
        %488 = vmatprep.subr.mxu0 0.0
        %489 = vmatpush1.msra.mxu0 0.0
        %490 = vmatprep.subr.mxu0 0.0
        %491 = vmatpush1.msra.mxu0 0.0
        %492 = vmatprep.subr.mxu0 0.0
        %493 = vmatpush1.msra.mxu0 0.0
        %494 = vmatprep.subr.mxu0 0.0
        %495 = vmatpush1.msra.mxu0 0.0
        %496 = vmatprep.subr.mxu0 0.0
        %497 = vmatpush1.msra.mxu0 0.0
        %498 = vmatprep.subr.mxu0 0.0
        %499 = vmatpush1.msra.mxu0 0.0
        %500 = vmatprep.subr.mxu0 0.0
        %501 = vmatpush1.msra.mxu0 0.0
        %502 = vmatprep.subr.mxu0 0.0
        %503 = vmatpush1.msra.mxu0 0.0
        %504 = vmatprep.subr.mxu0 0.0
        %505 = vmatpush1.msra.mxu0 0.0
        %506 = vmatprep.subr.mxu0 0.0
        %507 = vmatpush1.msra.mxu0 0.0
        %508 = vmatprep.subr.mxu0 0.0
        %509 = vmatpush1.msra.mxu0 0.0
        %510 = vmatprep.subr.mxu0 0.0
        %511 = vmatpush1.msra.mxu0 0.0
        %512 = vmatprep.subr.mxu0 0.0
        %513 = vmatpush1.msra.mxu0 0.0
        %514 = vmatprep.subr.mxu0 0.0
        %515 = vmatpush1.msra.mxu0 0.0
        %516 = vmatprep.subr.mxu0 0.0
        %517 = vmatpush1.msra.mxu0 0.0
        %518 = vmatprep.subr.mxu0 0.0
        %519 = vmatpush1.msra.mxu0 0.0
        %520 = vmatprep.subr.mxu0 0.0
        %521 = vmatpush1.msra.mxu0 0.0
        %522 = vmatprep.subr.mxu0 0.0
        %523 = vmatpush1.msra.mxu0 0.0
        %524 = vmatprep.subr.mxu0 0.0
        %525 = vmatpush1.msra.mxu0 0.0
        %526 = vmatprep.mubr.f32.mxu0 0.0
        %527 = vmatmul.mubr.f32.gmra.mrb[0].mxu0 %v457
        %v528 = vpop.f32.mrb[0].mxu0
        %v529 = vadd.f32 0.0, %v528
        %v530 = vpop.f32.mrb[0].mxu0
        %531 = vmatprep.mubr.f32.mxu0 0.0
        %532 = vmatmul.mubr.f32.gmra.mrb[0].mxu0 %v460
        %v533 = vpop.f32.mrb[0].mxu0
        %v534 = vadd.f32 0.0, %v533
        %v535 = vpop.f32.mrb[0].mxu0
        %536 = vdwg.mxu0
        %vm537 = vcmp.le.f32.partialorder %v529, 0.0
        %vm538 = vcmp.le.f32.partialorder %v534, 0.0
        %v539 = vld [vmem:[%s381] sm:$0xff]
        %v540 = vld [vmem:[%s381 + $0x8] sm:$0xff]
        %v541 = vld [vmem:[#allocation10] sm:$0xff]
        %v542 = vld [vmem:[#allocation10 + $0x8] sm:$0xff]
        %v543 = vld [vmem:[#allocation10 + $0x10] sm:$0xff]
        %v544 = vld [vmem:[#allocation10 + $0x18] sm:$0xff]
        %v545 = vld [vmem:[#allocation10 + $0x20] sm:$0xff]
        %vm546 = vcmask 326656
        %v548 = vsel %vm546, %v539, 0
        %v551 = vsel %vm546, %v540, 0
        %553 = vmatprep.subr.mxu0 0.0
        %554 = vmatpush1.msra.mxu0 %v541
        %555 = vmatprep.subr.mxu0 0.0
        %556 = vmatpush1.msra.mxu0 %v542
        %557 = vmatprep.subr.mxu0 0.0
        %558 = vmatpush1.msra.mxu0 %v543
        %559 = vmatprep.subr.mxu0 0.0
        %560 = vmatpush1.msra.mxu0 %v544
        %561 = vmatprep.subr.mxu0 0.0
        %562 = vmatpush1.msra.mxu0 %v545
        %563 = vmatprep.subr.mxu0 0.0
        %564 = vmatpush1.msra.mxu0 0.0
        %565 = vmatprep.subr.mxu0 0.0
        %566 = vmatpush1.msra.mxu0 0.0
        %567 = vmatprep.subr.mxu0 0.0
        %568 = vmatpush1.msra.mxu0 0.0
        %569 = vmatprep.subr.mxu0 0.0
        %570 = vmatpush1.msra.mxu0 0.0
        %571 = vmatprep.subr.mxu0 0.0
        %572 = vmatpush1.msra.mxu0 0.0
        %573 = vmatprep.subr.mxu0 0.0
        %574 = vmatpush1.msra.mxu0 0.0
        %575 = vmatprep.subr.mxu0 0.0
        %576 = vmatpush1.msra.mxu0 0.0
        %577 = vmatprep.subr.mxu0 0.0
        %578 = vmatpush1.msra.mxu0 0.0
        %579 = vmatprep.subr.mxu0 0.0
        %580 = vmatpush1.msra.mxu0 0.0
        %581 = vmatprep.subr.mxu0 0.0
        %582 = vmatpush1.msra.mxu0 0.0
        %583 = vmatprep.subr.mxu0 0.0
        %584 = vmatpush1.msra.mxu0 0.0
        %585 = vmatprep.subr.mxu0 0.0
        %586 = vmatpush1.msra.mxu0 0.0
        %587 = vmatprep.subr.mxu0 0.0
        %588 = vmatpush1.msra.mxu0 0.0
        %589 = vmatprep.subr.mxu0 0.0
        %590 = vmatpush1.msra.mxu0 0.0
        %591 = vmatprep.subr.mxu0 0.0
        %592 = vmatpush1.msra.mxu0 0.0
        %593 = vmatprep.subr.mxu0 0.0
        %594 = vmatpush1.msra.mxu0 0.0
        %595 = vmatprep.subr.mxu0 0.0
        %596 = vmatpush1.msra.mxu0 0.0
        %597 = vmatprep.subr.mxu0 0.0
        %598 = vmatpush1.msra.mxu0 0.0
        %599 = vmatprep.subr.mxu0 0.0
        %600 = vmatpush1.msra.mxu0 0.0
        %601 = vmatprep.subr.mxu0 0.0
        %602 = vmatpush1.msra.mxu0 0.0
        %603 = vmatprep.subr.mxu0 0.0
        %604 = vmatpush1.msra.mxu0 0.0
        %605 = vmatprep.subr.mxu0 0.0
        %606 = vmatpush1.msra.mxu0 0.0
        %607 = vmatprep.subr.mxu0 0.0
        %608 = vmatpush1.msra.mxu0 0.0
        %609 = vmatprep.subr.mxu0 0.0
        %610 = vmatpush1.msra.mxu0 0.0
        %611 = vmatprep.subr.mxu0 0.0
        %612 = vmatpush1.msra.mxu0 0.0
        %613 = vmatprep.subr.mxu0 0.0
        %614 = vmatpush1.msra.mxu0 0.0
        %615 = vmatprep.subr.mxu0 0.0
        %616 = vmatpush1.msra.mxu0 0.0
        %617 = vmatprep.mubr.f32.mxu0 0.0
        %618 = vmatmul.mubr.f32.gmra.mrb[0].mxu0 %v548
        %v619 = vpop.f32.mrb[0].mxu0
        %v620 = vadd.f32 0.0, %v619
        %v621 = vpop.f32.mrb[0].mxu0
        %622 = vmatprep.mubr.f32.mxu0 0.0
        %623 = vmatmul.mubr.f32.gmra.mrb[0].mxu0 %v551
        %v624 = vpop.f32.mrb[0].mxu0
        %v625 = vadd.f32 0.0, %v624
        %v626 = vpop.f32.mrb[0].mxu0
        %627 = vdwg.mxu0
        %v628 = vmax.f32 %v620, 1e-05
        %v629 = vmax.f32 %v625, 1e-05
        %v630 = vrsqrt.pop %v628
        %v631 = vrsqrt.pop %v629
        %v632 = vsel %vm537, 1.0, 0.0
        %v633 = vsel %vm538, 1.0, 0.0
        %v634 = vmul.f32 %v630, %v632
        %v635 = vmul.f32 %v631, %v633
        %v636 = vpack.c.bf16 %v635, %v634
        %v637 = vld [vmem:[#allocation2] sm:$0xff]
        %v638 = vld [vmem:[#allocation2 + $0x8] sm:$0xff]
        %v639 = vld [vmem:[#allocation12] sm:$0xf]
        %v640 = vld [vmem:[#allocation12 + $0x4] sm:$0xf]
        %v641 = vld [vmem:[#allocation12 + $0x8] sm:$0xf]
        %v642 = vld [vmem:[#allocation12 + $0xc] sm:$0xf]
        %v643 = vld [vmem:[#allocation12 + $0x10] sm:$0xf]
        %v644 = vld [vmem:[#allocation12 + $0x14] sm:$0xf]
        %v645 = vld [vmem:[#allocation12 + $0x18] sm:$0xf]
        %v646 = vld [vmem:[#allocation12 + $0x1c] sm:$0xf]
        %v647 = vld [vmem:[#allocation12 + $0x20] sm:$0xf]
        %v648 = vld [vmem:[#allocation12 + $0x24] sm:$0xf]
        %v649 = vld [vmem:[#allocation12 + $0x28] sm:$0xf]
        %v650 = vld [vmem:[#allocation12 + $0x2c] sm:$0xf]
        %v651 = vld [vmem:[#allocation12 + $0x30] sm:$0xf]
        %v652 = vld [vmem:[#allocation12 + $0x34] sm:$0xf]
        %v653 = vld [vmem:[#allocation12 + $0x38] sm:$0xf]
        %v654 = vld [vmem:[#allocation12 + $0x3c] sm:$0xf]
        %v671 = vunpack.c.l.b16 %v639
        %v672 = vunpack.c.l.b16 %v640
        %v673 = vunpack.c.l.b16 %v641
        %v674 = vunpack.c.l.b16 %v642
        %v675 = vunpack.c.l.b16 %v643
        %v676 = vunpack.c.l.b16 %v644
        %v677 = vunpack.c.l.b16 %v645
        %v678 = vunpack.c.l.b16 %v646
        %v679 = vunpack.c.l.b16 %v647
        %v680 = vunpack.c.l.b16 %v648
        %v681 = vunpack.c.l.b16 %v649
        %v682 = vunpack.c.l.b16 %v650
        %v683 = vunpack.c.l.b16 %v651
        %v684 = vunpack.c.l.b16 %v652
        %v685 = vunpack.c.l.b16 %v653
        %v686 = vunpack.c.l.b16 %v654
        %v687 = vpack.c.b16 %v672, %v671
        %v688 = vpack.c.b16 %v674, %v673
        %v689 = vpack.c.b16 %v676, %v675
        %v690 = vpack.c.b16 %v678, %v677
        %v691 = vpack.c.b16 %v680, %v679
        %v692 = vpack.c.b16 %v682, %v681
        %v693 = vpack.c.b16 %v684, %v683
        %v694 = vpack.c.b16 %v686, %v685
        %703 = vmatprep.subr.bf16.mxu0 0
        %704 = vmatpush1.bf16.msra.mxu0 %v687
        %705 = vmatprep.subr.bf16.mxu0 0
        %706 = vmatpush1.bf16.msra.mxu0 %v688
        %707 = vmatprep.subr.bf16.mxu0 0
        %708 = vmatpush1.bf16.msra.mxu0 %v689
        %709 = vmatprep.subr.bf16.mxu0 0
        %710 = vmatpush1.bf16.msra.mxu0 %v690
        %711 = vmatprep.subr.bf16.mxu0 0
        %712 = vmatpush1.bf16.msra.mxu0 %v691
        %713 = vmatprep.subr.bf16.mxu0 0
        %714 = vmatpush1.bf16.msra.mxu0 %v692
        %715 = vmatprep.subr.bf16.mxu0 0
        %716 = vmatpush1.bf16.msra.mxu0 %v693
        %717 = vmatprep.subr.bf16.mxu0 0
        %718 = vmatpush1.bf16.msra.mxu0 %v694
        %719 = vmatprep.subr.bf16.mxu0 0
        %720 = vmatpush1.bf16.msra.mxu0 0
        %721 = vmatprep.subr.bf16.mxu0 0
        %722 = vmatpush1.bf16.msra.mxu0 0
        %723 = vmatprep.subr.bf16.mxu0 0
        %724 = vmatpush1.bf16.msra.mxu0 0
        %725 = vmatprep.subr.bf16.mxu0 0
        %726 = vmatpush1.bf16.msra.mxu0 0
        %727 = vmatprep.subr.bf16.mxu0 0
        %728 = vmatpush1.bf16.msra.mxu0 0
        %729 = vmatprep.subr.bf16.mxu0 0
        %730 = vmatpush1.bf16.msra.mxu0 0
        %731 = vmatprep.subr.bf16.mxu0 0
        %732 = vmatpush1.bf16.msra.mxu0 0
        %733 = vmatprep.subr.bf16.mxu0 0
        %734 = vmatpush1.bf16.msra.mxu0 0
        %735 = vmatprep.mubr.bf16.mxu0 0
        %736 = vmatmul.mubr.bf16.gmra.mrb[0].mxu0 %v636
        %v737 = vpop.f32.mrb[0].mxu0
        %v738 = vadd.f32 0.0, %v737
        %v739 = vpop.f32.mrb[0].mxu0
        %v740 = vpop.f32.mrb[0].mxu0
        %v741 = vadd.f32 0.0, %v740
        %v742 = vpop.f32.mrb[0].mxu0
        %743 = vdwg.mxu0
        %v744 = vadd.f32 %v637, %v738
        %v745 = vadd.f32 %v638, %v741
        %vm746 = vcmask 269312
        %747 = vst.msk [vmem:[#allocation2] sm:$0xff] %vm746, %v744
        %748 = vst.msk [vmem:[#allocation2 + $0x8] sm:$0xff] %vm746, %v745
        %v749 = vld [vmem:[#allocation3] sm:$0xff]
        %v750 = vld [vmem:[#allocation3 + $0x8] sm:$0xff]
        %751 = vadd.xlane.f32.xlu0 %v632
        %v752 = vpop.xlane.xlu0 %751
        %753 = vadd.xlane.f32.xlu0 %v633
        %v754 = vpop.xlane.xlu0 %753
        %v755 = vadd.f32 %v749, %v752
        %v756 = vadd.f32 %v750, %v754
        %vm757 = vcmask 7168
        %758 = vst.msk [vmem:[#allocation3] sm:$0xff] %vm757, %v755
        %759 = vst.msk [vmem:[#allocation3 + $0x8] sm:$0xff] %vm757, %v756
        // Predicated region
        $region81: #{tpu_custom_call.1} parent=47 // pred_check
          %p760 = pneg %p442
        $region82: #{tpu_custom_call.1} parent=47 // pred_check_branch
          %762 = sbr.rel (%p760) target = $region84
        $region83: #{tpu_custom_call.1} parent=47 // pred_region
          %v763 = vld [vmem:[#allocation2] sm:$0xff]
          %v764 = vld [vmem:[#allocation2 + $0x8] sm:$0xff]
          %v765 = vld [vmem:[%s381] sm:$0xff]
          %v766 = vld [vmem:[%s381 + $0x8] sm:$0xff]
          %v767 = vld [vmem:[#allocation3] sm:$0xff]
          %v768 = vld [vmem:[#allocation3 + $0x8] sm:$0xff]
          %v769 = vmax.f32 %v767, 1.0
          %v770 = vmax.f32 %v768, 1.0
          %v771 = vrcp.pop %v769
          %v772 = vmul.f32 1.0, %v771
          %v773 = vrcp.pop %v770
          %v774 = vmul.f32 1.0, %v773
          %v775 = vld [vmem:[#allocation13] sm:$0x1]
          %777 = vset.pattern.permute.xlu0 32
          %778 = vperm.xlu0 %777, %v763
          %v779 = vpop.permute.xlu0 %778
          %782 = vset.pattern.permute.xlu0 32
          %783 = vperm.xlu0 %782, %v764
          %v784 = vpop.permute.xlu0 %783
          %v786 = vmul.f32 %v765, %v779
          %v787 = vmul.f32 %v766, %v784
          %v788 = vsub.f32 %v763, %v786
          %v789 = vsub.f32 %v764, %v787
          %791 = vset.pattern.permute.xlu0 0
          %792 = vperm.xlu0 %791, %v772
          %v793 = vpop.permute.xlu0 %792
          %796 = vset.pattern.permute.xlu0 0
          %797 = vperm.xlu0 %796, %v774
          %v798 = vpop.permute.xlu0 %797
          %v800 = vmul.f32 %v788, %v793
          %v801 = vmul.f32 %v789, %v798
          %v803 = vlaneseq
          %v804 = vshrl.u32 %v803, 7
          %v805 = vsub.s32 0, %v804
          %v806 = vrot.slane %v775, %v805
          %v808 = vmul.f32 %v806, %v800
          %v809 = vmul.f32 %v806, %v801
          %v810 = vld [vmem:[#allocation15] sm:$0x1]
          %v812 = vlaneseq
          %v813 = vshrl.u32 %v812, 7
          %v814 = vsub.s32 0, %v813
          %v815 = vrot.slane %v810, %v814
          %v817 = vadd.f32 %v808, %v815
          %v818 = vadd.f32 %v809, %v815
          %v819 = vmax.f32 %v817, 0.0
          %v820 = vmax.f32 %v818, 0.0
          %vm821 = vcmask 261120
          %822 = vst.msk [vmem:[%s436] sm:$0xff] %vm821, %v819
          %823 = vst.msk [vmem:[%s436 + $0x8] sm:$0xff] %vm821, %v820
        $region84: #{tpu_custom_call.1} parent=47 // pred_fallthru
          _
        %s824 = sand.u32 %s221, 1
        %s825 = scalar_lea.sflag [#allocation6], %s824
        %s826 = sand.u32 %s221, 1
        %s827 = smul.addr %s826, 16
        %s828 = scalar_lea.vmem [#allocation16], %s827
        // Predicated region
        $region85: #{tpu_custom_call.1} parent=47 // pred_check
          %p829 = pneg %p231
        $region86: #{tpu_custom_call.1} parent=47 // pred_check_branch
          %831 = sbr.rel (%p829) target = $region88
        $region87: #{tpu_custom_call.1} parent=47 // pred_region
          %s832 = smul.u32 2, %s33
          %s834 = ssub.s32 256, 256
          %835 = vsyncadd %s825, %s834
          %s836 = smul.addr %s832, 128
          %s837 = scalar_lea.hbm %s7, %s836
          %s838 = sshll.u32 %s828, 4
          %s839 = int_to_ptr.vmem [resolvable:$true] %s838
          %844 = dma.vmem_to_hbm [thread:$0]  %s839, 256, %s837, %s825, 128, 128, 8
        $region88: #{tpu_custom_call.1} parent=47 // pred_fallthru
          _
      $region48: #{tpu_custom_call.1} parent=5 // pred_fallthru
        _
      %p845 = scmp.le.s32.totalorder 2, %s24
      // Predicated region
      $region89: #{tpu_custom_call.1} parent=5 // pred_check
        %p846 = pneg %p845
      $region90: #{tpu_custom_call.1} parent=5 // pred_check_branch
        %848 = sbr.rel (%p846) target = $region92
      $region91: #{tpu_custom_call.1} parent=5 // pred_region
        %s849 = ssub.s32 %s24, 2
        // Predicated region
        $region93: #{tpu_custom_call.1} parent=91 // pred_check
          %p850 = pneg %p237
        $region94: #{tpu_custom_call.1} parent=91 // pred_check_branch
          %852 = sbr.rel (%p850) target = $region96
        $region95: #{tpu_custom_call.1} parent=91 // pred_region
          %s853 = sand.u32 %s222, 1
          %s854 = scalar_lea.sflag [#allocation6], %s853
          %s855 = sand.u32 %s222, 1
          %s856 = smul.addr %s855, 16
          %s857 = scalar_lea.vmem [#allocation16], %s856
          %858 = dma.done %s854, 256
        $region96: #{tpu_custom_call.1} parent=91 // pred_fallthru
          _
      $region92: #{tpu_custom_call.1} parent=5 // pred_fallthru
        _
    $region6: #{tpu_custom_call.1} parent=1 // loop_footer
      %s28 = sadd.s32 1, %s24
    $region7: #{tpu_custom_call.1} parent=1 // loop_footer_branch
      %23 = sbr.rel target = $region3
    $region8: #{tpu_custom_call.1} parent=1 // loop_exit
      _
    %859 = vsyncpa [#allocation5], 1
    %s860 = scalar_lea.sflag [#allocation5], 1
    %861 = vsyncpa %s860, 1
    %862 = vsyncpa [#allocation8], 1
    %s863 = scalar_lea.sflag [#allocation8], 1
    %864 = vsyncpa %s863, 1
    %865 = vsyncpa [#allocation11], 1
    %866 = vsyncpa [#allocation14], 1
    %867 = vsyncpa [#allocation6], 1
    %s868 = scalar_lea.sflag [#allocation6], 1
    %869 = vsyncpa %s868, 1

</llo_original>
